<compile_context>
chip_gen: v6e
topology: v6e:2x2x1
jax: 0.10.0
libtpu: 0.0.40
codegen_flags: <defaults>
</compile_context>

<pallas_src>
import jax
import jax.numpy as jnp
from jax.experimental import pallas as pl
from jax.experimental.pallas import tpu as pltpu


def _pick_tile(batch):
    """Pick the batch tile: as large as possible (512 preferred) while keeping
    >= 2 grid steps so both v7x TensorCores get work; never below 128 so MXU
    rows stay full on v5e and at least half-full on v6e/v7x."""
    for tb in (512, 256, 128):
        if batch // tb >= 2:
            return tb
    return 128


def _ae_kernel(x_ref,
               w1_ref, b1_ref,
               w2_ref, b2_ref,
               w3_ref, b3_ref,
               w4_ref, b4_ref,
               w5_ref, b5_ref,
               whead_ref, bhead_ref,
               out_ref):
    def lin(h, w_ref, b_ref):
        # bf16 MXU operands, f32 accumulation, f32 bias add (VPU-safe on v5e).
        return (jnp.dot(h.astype(jnp.bfloat16), w_ref[...],
                        preferred_element_type=jnp.float32)
                + b_ref[...])

    # Encoder: Linear(d_in, 3L) -> ReLU -> Linear(3L, 2L) -> ReLU -> Linear(2L, L)
    # (x_ref already holds sigmoid(emb) || x_num in bf16 -> single fused matmul.)
    h = jnp.maximum(lin(x_ref[...], w1_ref, b1_ref), 0.0)
    h = jnp.maximum(lin(h, w2_ref, b2_ref), 0.0)
    z = lin(h, w3_ref, b3_ref)                      # latent

    # Decoder: Linear(L, 2L) -> ReLU -> Linear(2L, 3L) -> ReLU
    d = jnp.maximum(lin(z, w4_ref, b4_ref), 0.0)
    d = jnp.maximum(lin(d, w5_ref, b5_ref), 0.0)

    # Fused heads [rec_cat || rec_num || zero-pad]: one lane-dense bf16 store.
    out_ref[...] = lin(d, whead_ref, bhead_ref).astype(out_ref.dtype)


def prepare_params(params):
    """One-time parameter preparation (hoisted out of the per-call forward path)."""
    sum_cats = params["wcat"].shape[1]
    n_num = params["wnum"].shape[1]
    head_dim = sum_cats + n_num
    head_pad = ((head_dim + 127) // 128) * 128

    to_bf16 = lambda a: a.astype(jnp.bfloat16)

    # Sigmoid commutes with the embedding gather: apply it once to the tables
    # (in f32, cast after) instead of per-row inside the kernel.
    emb_tables_sig = [to_bf16(jax.nn.sigmoid(t.astype(jnp.float32)))
                      for t in params["emb_tables"]]

    # Re-fuse layer 1 into one matrix; the concat'd input is built per call.
    w1 = to_bf16(jnp.concatenate([params["w1e"], params["w1n"]], axis=0))

    # Fuse + zero-pad the two output heads to a lane-dense width (multiple of 128).
    whead = jnp.concatenate([params["wcat"], params["wnum"]], axis=1)
    whead = to_bf16(jnp.pad(whead, ((0, 0), (0, head_pad - head_dim))))
    bhead = jnp.concatenate([params["bcat"], params["bnum"]], axis=1)
    bhead = jnp.pad(bhead, ((0, 0), (0, head_pad - head_dim)))

    weights = (w1, params["b1"],
               to_bf16(params["w2"]), params["b2"],
               to_bf16(params["w3"]), params["b3"],
               to_bf16(params["w4"]), params["b4"],
               to_bf16(params["w5"]), params["b5"],
               whead, bhead)

    return {
        "emb_tables_sig": emb_tables_sig,
        "weights": weights,
        "sum_cats": sum_cats,
        "n_num": n_num,
        "head_dim": head_dim,
        "head_pad": head_pad,
        "latent_dim": params["w3"].shape[1],
        "d_in": w1.shape[0],
    }


def autoencoder_forward(x_cat, x_num, prep):
    """Forward pass matching Autoencoder.forward(x_cat, x_num, training=False)."""
    # Glue (plain JAX): gather the pre-sigmoided bf16 tables and concat with x_num.
    emb_cols = [prep["emb_tables_sig"][i][x_cat[:, i]] for i in range(x_cat.shape[1])]
    x = jnp.concatenate(emb_cols + [x_num.astype(jnp.bfloat16)], axis=1)  # (B, d_in)

    B = x.shape[0]
    d_in = prep["d_in"]
    head_pad = prep["head_pad"]
    L = prep["latent_dim"]
    weights = prep["weights"]

    TB = _pick_tile(B)
    B_pad = ((B + TB - 1) // TB) * TB
    x_p = jnp.pad(x, ((0, B_pad - B), (0, 0)))

    batch_spec = lambda feat: pl.BlockSpec((TB, feat), lambda i: (i, 0))
    const_spec = lambda arr: pl.BlockSpec(arr.shape, lambda i: (0, 0))

    flops = 2 * B_pad * (d_in * 3 * L + 3 * L * 2 * L + 2 * L * L
                         + L * 2 * L + 2 * L * 3 * L + 3 * L * head_pad)
    bytes_accessed = (int(x_p.size) * 2
                      + sum(int(w.size) * w.dtype.itemsize for w in weights)
                      + B_pad * head_pad * 2)
    cost = pl.CostEstimate(flops=flops, transcendentals=0,
                           bytes_accessed=bytes_accessed)

    out = pl.pallas_call(
        _ae_kernel,
        out_shape=jax.ShapeDtypeStruct((B_pad, head_pad), jnp.bfloat16),
        grid=(B_pad // TB,),
        in_specs=[batch_spec(d_in)] + [const_spec(w) for w in weights],
        out_specs=batch_spec(head_pad),
        compiler_params=pltpu.CompilerParams(
            dimension_semantics=("parallel",)),
        cost_estimate=cost,
    )(x_p, *weights)

    out_f32 = out[:B].astype(jnp.float32)
    rec_cat = out_f32[:, :prep["sum_cats"]]
    rec_num = out_f32[:, prep["sum_cats"]:prep["head_dim"]]
    return rec_cat, rec_num


def init_params(key, embedding_sizes, n_num, latent_dim):
    """Deterministic synthetic parameter init (shapes from Autoencoder.__init__)."""
    n_emb = sum(s for _, s in embedding_sizes)
    sum_cats = sum(c for c, _ in embedding_sizes)
    d_in = n_emb + n_num
    L = latent_dim

    keys = iter(jax.random.split(key, 32))

    def dense(kin, kout):
        kw = next(keys)
        kb = next(keys)
        scale = 1.0 / jnp.sqrt(jnp.float32(kin))
        w = jax.random.uniform(kw, (kin, kout), jnp.float32, -scale, scale)
        b = jax.random.uniform(kb, (1, kout), jnp.float32, -scale, scale)
        return w, b

    emb_tables = [
        jax.random.normal(next(keys), (cats, size), jnp.float32)
        for cats, size in embedding_sizes
    ]

    w1, b1 = dense(d_in, 3 * L)
    w2, b2 = dense(3 * L, 2 * L)
    w3, b3 = dense(2 * L, L)
    w4, b4 = dense(L, 2 * L)
    w5, b5 = dense(2 * L, 3 * L)
    wcat, bcat = dense(3 * L, sum_cats)
    wnum, bnum = dense(3 * L, n_num)

    return {
        "emb_tables": emb_tables,
        "w1e": w1[:n_emb], "w1n": w1[n_emb:], "b1": b1,
        "w2": w2, "b2": b2,
        "w3": w3, "b3": b3,
        "w4": w4, "b4": b4,
        "w5": w5, "b5": b5,
        "wcat": wcat, "bcat": bcat,
        "wnum": wnum, "bnum": bnum,
    }


def reference_forward(x_cat, x_num, params):
    """Pure-JAX f32 reference mirroring the PyTorch module (eval mode)."""
    emb_cols = [params["emb_tables"][i][x_cat[:, i]] for i in range(x_cat.shape[1])]
    emb = jax.nn.sigmoid(jnp.concatenate(emb_cols, axis=1))
    x = jnp.concatenate([emb, x_num], axis=1)
    w1 = jnp.concatenate([params["w1e"], params["w1n"]], axis=0)
    h = jnp.maximum(x @ w1 + params["b1"], 0.0)
    h = jnp.maximum(h @ params["w2"] + params["b2"], 0.0)
    z = h @ params["w3"] + params["b3"]
    d = jnp.maximum(z @ params["w4"] + params["b4"], 0.0)
    d = jnp.maximum(d @ params["w5"] + params["b5"], 0.0)
    return d @ params["wcat"] + params["bcat"], d @ params["wnum"] + params["bnum"]


if __name__ == "__main__":
    # Module-consistent shapes. batch=256 -> _pick_tile keeps two grid steps
    # (TB=128) so the batch pipeline / megacore path is actually exercised;
    # large batches automatically get 512-row tiles.
    embedding_sizes = [(10, 4), (7, 3), (5, 2)]   # (categories, emb_dim) per cat col
    n_num = 6
    latent_dim = 16
    batch = 256

    root = jax.random.PRNGKey(0)
    k_params, k_cat, k_num = jax.random.split(root, 3)

    params = init_params(k_params, embedding_sizes, n_num, latent_dim)
    prep = prepare_params(params)                 # one-time prep (hoisted)

    cat_keys = jax.random.split(k_cat, len(embedding_sizes))
    x_cat = jnp.stack(
        [jax.random.randint(cat_keys[i], (batch,), 0, embedding_sizes[i][0])
         for i in range(len(embedding_sizes))],
        axis=1,
    ).astype(jnp.int32)                           # (batch, n_cat_cols)
    x_num = jax.random.normal(k_num, (batch, n_num), jnp.float32)

    rec_cat, rec_num = autoencoder_forward(x_cat, x_num, prep)
    jax.block_until_ready((rec_cat, rec_num))

    ref_cat, ref_num = reference_forward(x_cat, x_num, params)
    assert rec_cat.shape == (batch, sum(c for c, _ in embedding_sizes))
    assert rec_num.shape == (batch, n_num)
    # bf16 MXU operands + bf16 output store vs pure-f32 reference -> loose tolerance.
    assert jnp.allclose(rec_cat, ref_cat, atol=5e-2, rtol=5e-2)
    assert jnp.allclose(rec_num, ref_num, atol=5e-2, rtol=5e-2)

    print("KERNEL_OK")
</pallas_src>

<mosaic_0001>
module attributes {stable_mosaic.version = 11 : i64} {
  func.func @_ae_kernel(%arg0: i32, %arg1: memref<128x15xbf16, #tpu.memory_space<vmem>>, %arg2: memref<15x48xbf16, #tpu.memory_space<vmem>>, %arg3: memref<1x48xf32, #tpu.memory_space<vmem>>, %arg4: memref<48x32xbf16, #tpu.memory_space<vmem>>, %arg5: memref<1x32xf32, #tpu.memory_space<vmem>>, %arg6: memref<32x16xbf16, #tpu.memory_space<vmem>>, %arg7: memref<1x16xf32, #tpu.memory_space<vmem>>, %arg8: memref<16x32xbf16, #tpu.memory_space<vmem>>, %arg9: memref<1x32xf32, #tpu.memory_space<vmem>>, %arg10: memref<32x48xbf16, #tpu.memory_space<vmem>>, %arg11: memref<1x48xf32, #tpu.memory_space<vmem>>, %arg12: memref<48x128xbf16, #tpu.memory_space<vmem>>, %arg13: memref<1x128xf32, #tpu.memory_space<vmem>>, %arg14: memref<128x128xbf16, #tpu.memory_space<vmem>>) attributes {dimension_semantics = [#tpu.dimension_semantics<parallel>], iteration_bounds = array<i64: 2>, scalar_prefetch = 0 : i64, scratch_operands = 0 : i64, tpu.core_type = #tpu.core_type<tc>, window_params = [{transform_indices = @transform_0, window_bounds = array<i64: 128, 15>}, {pipeline_mode = #tpu.pipeline_mode<synchronous>, transform_indices = @transform_1, window_bounds = array<i64: 15, 48>}, {pipeline_mode = #tpu.pipeline_mode<synchronous>, transform_indices = @transform_2, window_bounds = array<i64: 1, 48>}, {pipeline_mode = #tpu.pipeline_mode<synchronous>, transform_indices = @transform_3, window_bounds = array<i64: 48, 32>}, {pipeline_mode = #tpu.pipeline_mode<synchronous>, transform_indices = @transform_4, window_bounds = array<i64: 1, 32>}, {pipeline_mode = #tpu.pipeline_mode<synchronous>, transform_indices = @transform_5, window_bounds = array<i64: 32, 16>}, {pipeline_mode = #tpu.pipeline_mode<synchronous>, transform_indices = @transform_6, window_bounds = array<i64: 1, 16>}, {pipeline_mode = #tpu.pipeline_mode<synchronous>, transform_indices = @transform_7, window_bounds = array<i64: 16, 32>}, {pipeline_mode = #tpu.pipeline_mode<synchronous>, transform_indices = @transform_8, window_bounds = array<i64: 1, 32>}, {pipeline_mode = #tpu.pipeline_mode<synchronous>, transform_indices = @transform_9, window_bounds = array<i64: 32, 48>}, {pipeline_mode = #tpu.pipeline_mode<synchronous>, transform_indices = @transform_10, window_bounds = array<i64: 1, 48>}, {pipeline_mode = #tpu.pipeline_mode<synchronous>, transform_indices = @transform_11, window_bounds = array<i64: 48, 128>}, {pipeline_mode = #tpu.pipeline_mode<synchronous>, transform_indices = @transform_12, window_bounds = array<i64: 1, 128>}, {transform_indices = @transform_13, window_bounds = array<i64: 128, 128>}]} {
    %c0 = arith.constant 0 : index
    %c0_0 = arith.constant 0 : index
    %0 = vector.load %arg1[%c0, %c0_0] : memref<128x15xbf16, #tpu.memory_space<vmem>>, vector<128x15xbf16>
    %c0_1 = arith.constant 0 : index
    %c0_2 = arith.constant 0 : index
    %1 = vector.load %arg2[%c0_1, %c0_2] : memref<15x48xbf16, #tpu.memory_space<vmem>>, vector<15x48xbf16>
    %cst = arith.constant dense<0.000000e+00> : vector<128x48xf32>
    %2 = tpu.matmul %0, %1, %cst {dimension_numbers = #tpu.dot_dimension_numbers<[1], [0], [0], [1], [0, 0, 1, 1], [], []>} : vector<128x15xbf16>, vector<15x48xbf16>, vector<128x48xf32> -> vector<128x48xf32>
    %c0_3 = arith.constant 0 : index
    %c0_4 = arith.constant 0 : index
    %3 = vector.load %arg3[%c0_3, %c0_4] : memref<1x48xf32, #tpu.memory_space<vmem>>, vector<1x48xf32>
    %4 = vector.broadcast %3 : vector<1x48xf32> to vector<128x48xf32>
    %5 = arith.addf %2, %4 : vector<128x48xf32>
    %cst_5 = arith.constant 0.000000e+00 : f32
    %6 = vector.broadcast %cst_5 : f32 to vector<128x48xf32>
    %7 = arith.maximumf %5, %6 : vector<128x48xf32>
    %8 = arith.truncf %7 : vector<128x48xf32> to vector<128x48xbf16>
    %c0_6 = arith.constant 0 : index
    %c0_7 = arith.constant 0 : index
    %9 = vector.load %arg4[%c0_6, %c0_7] : memref<48x32xbf16, #tpu.memory_space<vmem>>, vector<48x32xbf16>
    %cst_8 = arith.constant dense<0.000000e+00> : vector<128x32xf32>
    %10 = tpu.matmul %8, %9, %cst_8 {dimension_numbers = #tpu.dot_dimension_numbers<[1], [0], [0], [1], [0, 0, 1, 1], [], []>} : vector<128x48xbf16>, vector<48x32xbf16>, vector<128x32xf32> -> vector<128x32xf32>
    %c0_9 = arith.constant 0 : index
    %c0_10 = arith.constant 0 : index
    %11 = vector.load %arg5[%c0_9, %c0_10] : memref<1x32xf32, #tpu.memory_space<vmem>>, vector<1x32xf32>
    %12 = vector.broadcast %11 : vector<1x32xf32> to vector<128x32xf32>
    %13 = arith.addf %10, %12 : vector<128x32xf32>
    %cst_11 = arith.constant 0.000000e+00 : f32
    %14 = vector.broadcast %cst_11 : f32 to vector<128x32xf32>
    %15 = arith.maximumf %13, %14 : vector<128x32xf32>
    %16 = arith.truncf %15 : vector<128x32xf32> to vector<128x32xbf16>
    %c0_12 = arith.constant 0 : index
    %c0_13 = arith.constant 0 : index
    %17 = vector.load %arg6[%c0_12, %c0_13] : memref<32x16xbf16, #tpu.memory_space<vmem>>, vector<32x16xbf16>
    %cst_14 = arith.constant dense<0.000000e+00> : vector<128x16xf32>
    %18 = tpu.matmul %16, %17, %cst_14 {dimension_numbers = #tpu.dot_dimension_numbers<[1], [0], [0], [1], [0, 0, 1, 1], [], []>} : vector<128x32xbf16>, vector<32x16xbf16>, vector<128x16xf32> -> vector<128x16xf32>
    %c0_15 = arith.constant 0 : index
    %c0_16 = arith.constant 0 : index
    %19 = vector.load %arg7[%c0_15, %c0_16] : memref<1x16xf32, #tpu.memory_space<vmem>>, vector<1x16xf32>
    %20 = vector.broadcast %19 : vector<1x16xf32> to vector<128x16xf32>
    %21 = arith.addf %18, %20 : vector<128x16xf32>
    %22 = arith.truncf %21 : vector<128x16xf32> to vector<128x16xbf16>
    %c0_17 = arith.constant 0 : index
    %c0_18 = arith.constant 0 : index
    %23 = vector.load %arg8[%c0_17, %c0_18] : memref<16x32xbf16, #tpu.memory_space<vmem>>, vector<16x32xbf16>
    %cst_19 = arith.constant dense<0.000000e+00> : vector<128x32xf32>
    %24 = tpu.matmul %22, %23, %cst_19 {dimension_numbers = #tpu.dot_dimension_numbers<[1], [0], [0], [1], [0, 0, 1, 1], [], []>} : vector<128x16xbf16>, vector<16x32xbf16>, vector<128x32xf32> -> vector<128x32xf32>
    %c0_20 = arith.constant 0 : index
    %c0_21 = arith.constant 0 : index
    %25 = vector.load %arg9[%c0_20, %c0_21] : memref<1x32xf32, #tpu.memory_space<vmem>>, vector<1x32xf32>
    %26 = vector.broadcast %25 : vector<1x32xf32> to vector<128x32xf32>
    %27 = arith.addf %24, %26 : vector<128x32xf32>
    %cst_22 = arith.constant 0.000000e+00 : f32
    %28 = vector.broadcast %cst_22 : f32 to vector<128x32xf32>
    %29 = arith.maximumf %27, %28 : vector<128x32xf32>
    %30 = arith.truncf %29 : vector<128x32xf32> to vector<128x32xbf16>
    %c0_23 = arith.constant 0 : index
    %c0_24 = arith.constant 0 : index
    %31 = vector.load %arg10[%c0_23, %c0_24] : memref<32x48xbf16, #tpu.memory_space<vmem>>, vector<32x48xbf16>
    %cst_25 = arith.constant dense<0.000000e+00> : vector<128x48xf32>
    %32 = tpu.matmul %30, %31, %cst_25 {dimension_numbers = #tpu.dot_dimension_numbers<[1], [0], [0], [1], [0, 0, 1, 1], [], []>} : vector<128x32xbf16>, vector<32x48xbf16>, vector<128x48xf32> -> vector<128x48xf32>
    %c0_26 = arith.constant 0 : index
    %c0_27 = arith.constant 0 : index
    %33 = vector.load %arg11[%c0_26, %c0_27] : memref<1x48xf32, #tpu.memory_space<vmem>>, vector<1x48xf32>
    %34 = vector.broadcast %33 : vector<1x48xf32> to vector<128x48xf32>
    %35 = arith.addf %32, %34 : vector<128x48xf32>
    %cst_28 = arith.constant 0.000000e+00 : f32
    %36 = vector.broadcast %cst_28 : f32 to vector<128x48xf32>
    %37 = arith.maximumf %35, %36 : vector<128x48xf32>
    %38 = arith.truncf %37 : vector<128x48xf32> to vector<128x48xbf16>
    %c0_29 = arith.constant 0 : index
    %c0_30 = arith.constant 0 : index
    %39 = vector.load %arg12[%c0_29, %c0_30] : memref<48x128xbf16, #tpu.memory_space<vmem>>, vector<48x128xbf16>
    %cst_31 = arith.constant dense<0.000000e+00> : vector<128x128xf32>
    %40 = tpu.matmul %38, %39, %cst_31 {dimension_numbers = #tpu.dot_dimension_numbers<[1], [0], [0], [1], [0, 0, 1, 1], [], []>} : vector<128x48xbf16>, vector<48x128xbf16>, vector<128x128xf32> -> vector<128x128xf32>
    %c0_32 = arith.constant 0 : index
    %c0_33 = arith.constant 0 : index
    %41 = vector.load %arg13[%c0_32, %c0_33] : memref<1x128xf32, #tpu.memory_space<vmem>>, vector<1x128xf32>
    %42 = vector.broadcast %41 : vector<1x128xf32> to vector<128x128xf32>
    %43 = arith.addf %40, %42 : vector<128x128xf32>
    %44 = arith.truncf %43 : vector<128x128xf32> to vector<128x128xbf16>
    %c0_34 = arith.constant 0 : index
    %c0_35 = arith.constant 0 : index
    %45 = vector.load %arg14[%c0_34, %c0_35] : memref<128x128xbf16, #tpu.memory_space<vmem>>, vector<128x128xbf16>
    tpu.vector_store %arg14[%c0_34, %c0_35], %44 {strides = array<i32>} : memref<128x128xbf16, #tpu.memory_space<vmem>>, vector<128x128xbf16>,
    return
  }
  func.func @transform_0(%arg0: i32) -> (i32, i32) {
    %c0_i32 = arith.constant 0 : i32
    %c0_i32_0 = arith.constant 0 : i32
    return %arg0, %c0_i32 : i32, i32
  }
  func.func @transform_1(%arg0: i32) -> (i32, i32) {
    %c0_i32 = arith.constant 0 : i32
    %c0_i32_0 = arith.constant 0 : i32
    %c0_i32_1 = arith.constant 0 : i32
    return %c0_i32, %c0_i32_0 : i32, i32
  }
  func.func @transform_2(%arg0: i32) -> (i32, i32) {
    %c0_i32 = arith.constant 0 : i32
    %c0_i32_0 = arith.constant 0 : i32
    %c0_i32_1 = arith.constant 0 : i32
    return %c0_i32, %c0_i32_0 : i32, i32
  }
  func.func @transform_3(%arg0: i32) -> (i32, i32) {
    %c0_i32 = arith.constant 0 : i32
    %c0_i32_0 = arith.constant 0 : i32
    %c0_i32_1 = arith.constant 0 : i32
    return %c0_i32, %c0_i32_0 : i32, i32
  }
  func.func @transform_4(%arg0: i32) -> (i32, i32) {
    %c0_i32 = arith.constant 0 : i32
    %c0_i32_0 = arith.constant 0 : i32
    %c0_i32_1 = arith.constant 0 : i32
    return %c0_i32, %c0_i32_0 : i32, i32
  }
  func.func @transform_5(%arg0: i32) -> (i32, i32) {
    %c0_i32 = arith.constant 0 : i32
    %c0_i32_0 = arith.constant 0 : i32
    %c0_i32_1 = arith.constant 0 : i32
    return %c0_i32, %c0_i32_0 : i32, i32
  }
  func.func @transform_6(%arg0: i32) -> (i32, i32) {
    %c0_i32 = arith.constant 0 : i32
    %c0_i32_0 = arith.constant 0 : i32
    %c0_i32_1 = arith.constant 0 : i32
    return %c0_i32, %c0_i32_0 : i32, i32
  }
  func.func @transform_7(%arg0: i32) -> (i32, i32) {
    %c0_i32 = arith.constant 0 : i32
    %c0_i32_0 = arith.constant 0 : i32
    %c0_i32_1 = arith.constant 0 : i32
    return %c0_i32, %c0_i32_0 : i32, i32
  }
  func.func @transform_8(%arg0: i32) -> (i32, i32) {
    %c0_i32 = arith.constant 0 : i32
    %c0_i32_0 = arith.constant 0 : i32
    %c0_i32_1 = arith.constant 0 : i32
    return %c0_i32, %c0_i32_0 : i32, i32
  }
  func.func @transform_9(%arg0: i32) -> (i32, i32) {
    %c0_i32 = arith.constant 0 : i32
    %c0_i32_0 = arith.constant 0 : i32
    %c0_i32_1 = arith.constant 0 : i32
    return %c0_i32, %c0_i32_0 : i32, i32
  }
  func.func @transform_10(%arg0: i32) -> (i32, i32) {
    %c0_i32 = arith.constant 0 : i32
    %c0_i32_0 = arith.constant 0 : i32
    %c0_i32_1 = arith.constant 0 : i32
    return %c0_i32, %c0_i32_0 : i32, i32
  }
  func.func @transform_11(%arg0: i32) -> (i32, i32) {
    %c0_i32 = arith.constant 0 : i32
    %c0_i32_0 = arith.constant 0 : i32
    %c0_i32_1 = arith.constant 0 : i32
    return %c0_i32, %c0_i32_0 : i32, i32
  }
  func.func @transform_12(%arg0: i32) -> (i32, i32) {
    %c0_i32 = arith.constant 0 : i32
    %c0_i32_0 = arith.constant 0 : i32
    %c0_i32_1 = arith.constant 0 : i32
    return %c0_i32, %c0_i32_0 : i32, i32
  }
  func.func @transform_13(%arg0: i32) -> (i32, i32) {
    %c0_i32 = arith.constant 0 : i32
    %c0_i32_0 = arith.constant 0 : i32
    return %arg0, %c0_i32 : i32, i32
  }
}

</mosaic_0001>

<llo_original>
// kernel: tpu_custom_call.1
$region0: #{tpu_custom_call.1}
  #allocation0 [shape = 'u32[]', space=smem, size = 0x4, offset = 0x4, fixed_abs, tag = 'smem constant byte address 0x4 - core index']
  #allocation1 [shape = 'u32[144,128]{1,0:T(1,128)}', space=vmem, size = 0x12000, scoped, tag = 'internal scratch']
  %s0 = inlined_call_operand.vmem [shape: bf16[256,15], index: 0, kind: input, shape index: {}]
  %s1 = inlined_call_operand.vmem [shape: bf16[15,48], index: 1, kind: input, shape index: {}]
  %s2 = inlined_call_operand.vmem [shape: f32[1,48], index: 2, kind: input, shape index: {}]
  %s3 = inlined_call_operand.vmem [shape: bf16[48,32], index: 3, kind: input, shape index: {}]
  %s4 = inlined_call_operand.vmem [shape: f32[1,32], index: 4, kind: input, shape index: {}]
  %s5 = inlined_call_operand.vmem [shape: bf16[32,16], index: 5, kind: input, shape index: {}]
  %s6 = inlined_call_operand.vmem [shape: f32[1,16], index: 6, kind: input, shape index: {}]
  %s7 = inlined_call_operand.vmem [shape: bf16[16,32], index: 7, kind: input, shape index: {}]
  %s8 = inlined_call_operand.vmem [shape: f32[1,32], index: 8, kind: input, shape index: {}]
  %s9 = inlined_call_operand.vmem [shape: bf16[32,48], index: 9, kind: input, shape index: {}]
  %s10 = inlined_call_operand.vmem [shape: f32[1,48], index: 10, kind: input, shape index: {}]
  %s11 = inlined_call_operand.vmem [shape: bf16[48,128], index: 11, kind: input, shape index: {}]
  %s12 = inlined_call_operand.vmem [shape: f32[1,128], index: 12, kind: input, shape index: {}]
  %s13 = inlined_call_operand.hbm [shape: bf16[256,128], index: 13, kind: output, shape index: {}]
  %s14 = sld [smem:[#allocation0]]
  $region85: #{tpu_custom_call.1} parent=0
    _
  %s16 = ssub.s32 1, %s14
  %s17 = scalar_select 0, %s16, %s14
  $region1: #{tpu_custom_call.1} parent=0
    #allocation2 [shape = 'u8[65536]{0}', space=vmem, size = 0x10000, scoped, tag = 'output window, operand 0']
    #allocation3 [shape = 's32[2]{0}', space=sflag, size = 0x8, scoped, tag = 'scoped memory for tpu_custom_call.1']
    %18 = vsyncpa [#allocation3], 0
    %s19 = scalar_lea.sflag [#allocation3], 1
    %20 = vsyncpa %s19, 0
    loop: start=0, step=1, limit=4
    $region2: #{tpu_custom_call.1} parent=1 // loop_pre_header
      _
    $region3: #{tpu_custom_call.1} parent=1 // loop_header
      %s22 = sphi 0, %s26
      %p23 = scmp.ge.s32.totalorder %s22, 4
      %s32 = sphi 0, %s34
      %s35 = sphi 0, %s32
      %s36 = sphi 0, %s35
      %s52 = sphi 0, %s36
      %s56 = sphi 0, %s56
      %s58 = sphi 0, %s56
      %s59 = sphi 0, %s58
      %s73 = sphi 0, %s59
      %s77 = sphi 0, %s77
      %s79 = sphi 0, %s77
      %s80 = sphi 0, %s79
      %s94 = sphi 0, %s80
      %s98 = sphi 0, %s98
      %s100 = sphi 0, %s98
      %s101 = sphi 0, %s100
      %s115 = sphi 0, %s101
      %s119 = sphi 0, %s119
      %s121 = sphi 0, %s119
      %s122 = sphi 0, %s121
      %s136 = sphi 0, %s122
      %s140 = sphi 0, %s140
      %s142 = sphi 0, %s140
      %s143 = sphi 0, %s142
      %s157 = sphi 0, %s143
      %s161 = sphi 0, %s161
      %s163 = sphi 0, %s161
      %s164 = sphi 0, %s163
      %s178 = sphi 0, %s164
      %s182 = sphi 0, %s182
      %s184 = sphi 0, %s182
      %s185 = sphi 0, %s184
      %s199 = sphi 0, %s185
      %s203 = sphi 0, %s203
      %s205 = sphi 0, %s203
      %s206 = sphi 0, %s205
      %s220 = sphi 0, %s206
      %s224 = sphi 0, %s224
      %s226 = sphi 0, %s224
      %s227 = sphi 0, %s226
      %s241 = sphi 0, %s227
      %s245 = sphi 0, %s245
      %s247 = sphi 0, %s245
      %s248 = sphi 0, %s247
      %s262 = sphi 0, %s248
      %s266 = sphi 0, %s266
      %s268 = sphi 0, %s266
      %s269 = sphi 0, %s268
      %s283 = sphi 0, %s269
      %s287 = sphi 0, %s287
      %s289 = sphi 0, %s287
      %s290 = sphi 0, %s289
      %s304 = sphi 0, %s290
      %s310 = sphi 0, %s312
      %s313 = sphi 0, %s310
      %s314 = sphi 0, %s313
      %s330 = sphi 0, %s314
    $region4: #{tpu_custom_call.1} parent=1 // loop_header_branch
      %25 = sbr.rel (%p23) target = $region8
    $region5: #{tpu_custom_call.1} parent=1 // loop_body
      %s27 = ssub.s32 %s22, 1
      %s28 = ssub.s32 %s22, 2
      %s29 = sadd.s32 %s22, 1
      %s30 = ssub.s32 %s22, %s29
      %p31 = scmp.eq.s32.totalorder %s30, 0
      %s33 = sadd.s32 %s32, 1
      %s34 = scalar_select %p31, %s32, %s33
      %p37 = pneg %p31
      %p38 = scmp.eq.s32.totalorder %s22, 1
      %p39 = por %p37, %p38
      %p40 = scmp.ne.s32.totalorder %s32, %s35
      %p41 = scmp.eq.s32.totalorder %s22, 0
      %p42 = por %p40, %p41
      %p43 = scmp.ne.s32.totalorder %s32, %s35
      %p44 = scmp.eq.s32.totalorder %s27, 1
      %p45 = por %p43, %p44
      %p46 = scmp.ne.s32.totalorder %s35, %s36
      %p47 = scmp.eq.s32.totalorder %s27, 0
      %p48 = por %p46, %p47
      %p49 = scmp.ne.s32.totalorder %s35, %s36
      %p50 = scmp.eq.s32.totalorder %s28, 1
      %p51 = por %p49, %p50
      %p53 = scmp.ne.s32.totalorder %s36, %s52
      %p54 = scmp.eq.s32.totalorder %s28, 0
      %p55 = por %p53, %p54
      %s57 = sadd.s32 %s56, 1
      %p60 = scmp.eq.s32.totalorder %s22, 1
      %p61 = scmp.ne.s32.totalorder %s56, %s58
      %p62 = scmp.eq.s32.totalorder %s22, 0
      %p63 = por %p61, %p62
      %p64 = scmp.ne.s32.totalorder %s56, %s58
      %p65 = scmp.eq.s32.totalorder %s27, 1
      %p66 = por %p64, %p65
      %p67 = scmp.ne.s32.totalorder %s58, %s59
      %p68 = scmp.eq.s32.totalorder %s27, 0
      %p69 = por %p67, %p68
      %p70 = scmp.ne.s32.totalorder %s58, %s59
      %p71 = scmp.eq.s32.totalorder %s28, 1
      %p72 = por %p70, %p71
      %p74 = scmp.ne.s32.totalorder %s59, %s73
      %p75 = scmp.eq.s32.totalorder %s28, 0
      %p76 = por %p74, %p75
      %s78 = sadd.s32 %s77, 1
      %p81 = scmp.eq.s32.totalorder %s22, 1
      %p82 = scmp.ne.s32.totalorder %s77, %s79
      %p83 = scmp.eq.s32.totalorder %s22, 0
      %p84 = por %p82, %p83
      %p85 = scmp.ne.s32.totalorder %s77, %s79
      %p86 = scmp.eq.s32.totalorder %s27, 1
      %p87 = por %p85, %p86
      %p88 = scmp.ne.s32.totalorder %s79, %s80
      %p89 = scmp.eq.s32.totalorder %s27, 0
      %p90 = por %p88, %p89
      %p91 = scmp.ne.s32.totalorder %s79, %s80
      %p92 = scmp.eq.s32.totalorder %s28, 1
      %p93 = por %p91, %p92
      %p95 = scmp.ne.s32.totalorder %s80, %s94
      %p96 = scmp.eq.s32.totalorder %s28, 0
      %p97 = por %p95, %p96
      %s99 = sadd.s32 %s98, 1
      %p102 = scmp.eq.s32.totalorder %s22, 1
      %p103 = scmp.ne.s32.totalorder %s98, %s100
      %p104 = scmp.eq.s32.totalorder %s22, 0
      %p105 = por %p103, %p104
      %p106 = scmp.ne.s32.totalorder %s98, %s100
      %p107 = scmp.eq.s32.totalorder %s27, 1
      %p108 = por %p106, %p107
      %p109 = scmp.ne.s32.totalorder %s100, %s101
      %p110 = scmp.eq.s32.totalorder %s27, 0
      %p111 = por %p109, %p110
      %p112 = scmp.ne.s32.totalorder %s100, %s101
      %p113 = scmp.eq.s32.totalorder %s28, 1
      %p114 = por %p112, %p113
      %p116 = scmp.ne.s32.totalorder %s101, %s115
      %p117 = scmp.eq.s32.totalorder %s28, 0
      %p118 = por %p116, %p117
      %s120 = sadd.s32 %s119, 1
      %p123 = scmp.eq.s32.totalorder %s22, 1
      %p124 = scmp.ne.s32.totalorder %s119, %s121
      %p125 = scmp.eq.s32.totalorder %s22, 0
      %p126 = por %p124, %p125
      %p127 = scmp.ne.s32.totalorder %s119, %s121
      %p128 = scmp.eq.s32.totalorder %s27, 1
      %p129 = por %p127, %p128
      %p130 = scmp.ne.s32.totalorder %s121, %s122
      %p131 = scmp.eq.s32.totalorder %s27, 0
      %p132 = por %p130, %p131
      %p133 = scmp.ne.s32.totalorder %s121, %s122
      %p134 = scmp.eq.s32.totalorder %s28, 1
      %p135 = por %p133, %p134
      %p137 = scmp.ne.s32.totalorder %s122, %s136
      %p138 = scmp.eq.s32.totalorder %s28, 0
      %p139 = por %p137, %p138
      %s141 = sadd.s32 %s140, 1
      %p144 = scmp.eq.s32.totalorder %s22, 1
      %p145 = scmp.ne.s32.totalorder %s140, %s142
      %p146 = scmp.eq.s32.totalorder %s22, 0
      %p147 = por %p145, %p146
      %p148 = scmp.ne.s32.totalorder %s140, %s142
      %p149 = scmp.eq.s32.totalorder %s27, 1
      %p150 = por %p148, %p149
      %p151 = scmp.ne.s32.totalorder %s142, %s143
      %p152 = scmp.eq.s32.totalorder %s27, 0
      %p153 = por %p151, %p152
      %p154 = scmp.ne.s32.totalorder %s142, %s143
      %p155 = scmp.eq.s32.totalorder %s28, 1
      %p156 = por %p154, %p155
      %p158 = scmp.ne.s32.totalorder %s143, %s157
      %p159 = scmp.eq.s32.totalorder %s28, 0
      %p160 = por %p158, %p159
      %s162 = sadd.s32 %s161, 1
      %p165 = scmp.eq.s32.totalorder %s22, 1
      %p166 = scmp.ne.s32.totalorder %s161, %s163
      %p167 = scmp.eq.s32.totalorder %s22, 0
      %p168 = por %p166, %p167
      %p169 = scmp.ne.s32.totalorder %s161, %s163
      %p170 = scmp.eq.s32.totalorder %s27, 1
      %p171 = por %p169, %p170
      %p172 = scmp.ne.s32.totalorder %s163, %s164
      %p173 = scmp.eq.s32.totalorder %s27, 0
      %p174 = por %p172, %p173
      %p175 = scmp.ne.s32.totalorder %s163, %s164
      %p176 = scmp.eq.s32.totalorder %s28, 1
      %p177 = por %p175, %p176
      %p179 = scmp.ne.s32.totalorder %s164, %s178
      %p180 = scmp.eq.s32.totalorder %s28, 0
      %p181 = por %p179, %p180
      %s183 = sadd.s32 %s182, 1
      %p186 = scmp.eq.s32.totalorder %s22, 1
      %p187 = scmp.ne.s32.totalorder %s182, %s184
      %p188 = scmp.eq.s32.totalorder %s22, 0
      %p189 = por %p187, %p188
      %p190 = scmp.ne.s32.totalorder %s182, %s184
      %p191 = scmp.eq.s32.totalorder %s27, 1
      %p192 = por %p190, %p191
      %p193 = scmp.ne.s32.totalorder %s184, %s185
      %p194 = scmp.eq.s32.totalorder %s27, 0
      %p195 = por %p193, %p194
      %p196 = scmp.ne.s32.totalorder %s184, %s185
      %p197 = scmp.eq.s32.totalorder %s28, 1
      %p198 = por %p196, %p197
      %p200 = scmp.ne.s32.totalorder %s185, %s199
      %p201 = scmp.eq.s32.totalorder %s28, 0
      %p202 = por %p200, %p201
      %s204 = sadd.s32 %s203, 1
      %p207 = scmp.eq.s32.totalorder %s22, 1
      %p208 = scmp.ne.s32.totalorder %s203, %s205
      %p209 = scmp.eq.s32.totalorder %s22, 0
      %p210 = por %p208, %p209
      %p211 = scmp.ne.s32.totalorder %s203, %s205
      %p212 = scmp.eq.s32.totalorder %s27, 1
      %p213 = por %p211, %p212
      %p214 = scmp.ne.s32.totalorder %s205, %s206
      %p215 = scmp.eq.s32.totalorder %s27, 0
      %p216 = por %p214, %p215
      %p217 = scmp.ne.s32.totalorder %s205, %s206
      %p218 = scmp.eq.s32.totalorder %s28, 1
      %p219 = por %p217, %p218
      %p221 = scmp.ne.s32.totalorder %s206, %s220
      %p222 = scmp.eq.s32.totalorder %s28, 0
      %p223 = por %p221, %p222
      %s225 = sadd.s32 %s224, 1
      %p228 = scmp.eq.s32.totalorder %s22, 1
      %p229 = scmp.ne.s32.totalorder %s224, %s226
      %p230 = scmp.eq.s32.totalorder %s22, 0
      %p231 = por %p229, %p230
      %p232 = scmp.ne.s32.totalorder %s224, %s226
      %p233 = scmp.eq.s32.totalorder %s27, 1
      %p234 = por %p232, %p233
      %p235 = scmp.ne.s32.totalorder %s226, %s227
      %p236 = scmp.eq.s32.totalorder %s27, 0
      %p237 = por %p235, %p236
      %p238 = scmp.ne.s32.totalorder %s226, %s227
      %p239 = scmp.eq.s32.totalorder %s28, 1
      %p240 = por %p238, %p239
      %p242 = scmp.ne.s32.totalorder %s227, %s241
      %p243 = scmp.eq.s32.totalorder %s28, 0
      %p244 = por %p242, %p243
      %s246 = sadd.s32 %s245, 1
      %p249 = scmp.eq.s32.totalorder %s22, 1
      %p250 = scmp.ne.s32.totalorder %s245, %s247
      %p251 = scmp.eq.s32.totalorder %s22, 0
      %p252 = por %p250, %p251
      %p253 = scmp.ne.s32.totalorder %s245, %s247
      %p254 = scmp.eq.s32.totalorder %s27, 1
      %p255 = por %p253, %p254
      %p256 = scmp.ne.s32.totalorder %s247, %s248
      %p257 = scmp.eq.s32.totalorder %s27, 0
      %p258 = por %p256, %p257
      %p259 = scmp.ne.s32.totalorder %s247, %s248
      %p260 = scmp.eq.s32.totalorder %s28, 1
      %p261 = por %p259, %p260
      %p263 = scmp.ne.s32.totalorder %s248, %s262
      %p264 = scmp.eq.s32.totalorder %s28, 0
      %p265 = por %p263, %p264
      %s267 = sadd.s32 %s266, 1
      %p270 = scmp.eq.s32.totalorder %s22, 1
      %p271 = scmp.ne.s32.totalorder %s266, %s268
      %p272 = scmp.eq.s32.totalorder %s22, 0
      %p273 = por %p271, %p272
      %p274 = scmp.ne.s32.totalorder %s266, %s268
      %p275 = scmp.eq.s32.totalorder %s27, 1
      %p276 = por %p274, %p275
      %p277 = scmp.ne.s32.totalorder %s268, %s269
      %p278 = scmp.eq.s32.totalorder %s27, 0
      %p279 = por %p277, %p278
      %p280 = scmp.ne.s32.totalorder %s268, %s269
      %p281 = scmp.eq.s32.totalorder %s28, 1
      %p282 = por %p280, %p281
      %p284 = scmp.ne.s32.totalorder %s269, %s283
      %p285 = scmp.eq.s32.totalorder %s28, 0
      %p286 = por %p284, %p285
      %s288 = sadd.s32 %s287, 1
      %p291 = scmp.eq.s32.totalorder %s22, 1
      %p292 = scmp.ne.s32.totalorder %s287, %s289
      %p293 = scmp.eq.s32.totalorder %s22, 0
      %p294 = por %p292, %p293
      %p295 = scmp.ne.s32.totalorder %s287, %s289
      %p296 = scmp.eq.s32.totalorder %s27, 1
      %p297 = por %p295, %p296
      %p298 = scmp.ne.s32.totalorder %s289, %s290
      %p299 = scmp.eq.s32.totalorder %s27, 0
      %p300 = por %p298, %p299
      %p301 = scmp.ne.s32.totalorder %s289, %s290
      %p302 = scmp.eq.s32.totalorder %s28, 1
      %p303 = por %p301, %p302
      %p305 = scmp.ne.s32.totalorder %s290, %s304
      %p306 = scmp.eq.s32.totalorder %s28, 0
      %p307 = por %p305, %p306
      %s308 = ssub.s32 %s22, %s29
      %p309 = scmp.eq.s32.totalorder %s308, 0
      %s311 = sadd.s32 %s310, 1
      %s312 = scalar_select %p309, %s310, %s311
      %p315 = pneg %p309
      %p316 = scmp.eq.s32.totalorder %s22, 1
      %p317 = por %p315, %p316
      %p318 = scmp.ne.s32.totalorder %s310, %s313
      %p319 = scmp.eq.s32.totalorder %s22, 0
      %p320 = por %p318, %p319
      %p321 = scmp.ne.s32.totalorder %s310, %s313
      %p322 = scmp.eq.s32.totalorder %s27, 1
      %p323 = por %p321, %p322
      %p324 = scmp.ne.s32.totalorder %s313, %s314
      %p325 = scmp.eq.s32.totalorder %s27, 0
      %p326 = por %p324, %p325
      %p327 = scmp.ne.s32.totalorder %s313, %s314
      %p328 = scmp.eq.s32.totalorder %s28, 1
      %p329 = por %p327, %p328
      %p331 = scmp.ne.s32.totalorder %s314, %s330
      %p332 = scmp.eq.s32.totalorder %s28, 0
      %p333 = por %p331, %p332
      %p334 = scmp.le.s32.totalorder 1, %s22
      %p335 = scmp.lt.s32.totalorder %s22, 3
      %p336 = pnand %p334, %p335
      %p337 = pneg %p336
      // Predicated region
      $region9: #{tpu_custom_call.1} parent=5 // pred_check
        _
      $region10: #{tpu_custom_call.1} parent=5 // pred_check_branch
        %339 = sbr.rel (%p336) target = $region12
      $region11: #{tpu_custom_call.1} parent=5 // pred_region
        %s340 = ssub.s32 %s22, 1
        // Predicated region
        $region13: #{tpu_custom_call.1} parent=11 // pred_check
          %p341 = pneg %p69
        $region14: #{tpu_custom_call.1} parent=11 // pred_check_branch
          %343 = sbr.rel (%p341) target = $region16
        $region15: #{tpu_custom_call.1} parent=11 // pred_region
          _
        $region16: #{tpu_custom_call.1} parent=11 // pred_fallthru
          _
        // Predicated region
        $region17: #{tpu_custom_call.1} parent=11 // pred_check
          %p344 = pneg %p90
        $region18: #{tpu_custom_call.1} parent=11 // pred_check_branch
          %346 = sbr.rel (%p344) target = $region20
        $region19: #{tpu_custom_call.1} parent=11 // pred_region
          _
        $region20: #{tpu_custom_call.1} parent=11 // pred_fallthru
          _
        // Predicated region
        $region21: #{tpu_custom_call.1} parent=11 // pred_check
          %p347 = pneg %p111
        $region22: #{tpu_custom_call.1} parent=11 // pred_check_branch
          %349 = sbr.rel (%p347) target = $region24
        $region23: #{tpu_custom_call.1} parent=11 // pred_region
          _
        $region24: #{tpu_custom_call.1} parent=11 // pred_fallthru
          _
        // Predicated region
        $region25: #{tpu_custom_call.1} parent=11 // pred_check
          %p350 = pneg %p132
        $region26: #{tpu_custom_call.1} parent=11 // pred_check_branch
          %352 = sbr.rel (%p350) target = $region28
        $region27: #{tpu_custom_call.1} parent=11 // pred_region
          _
        $region28: #{tpu_custom_call.1} parent=11 // pred_fallthru
          _
        // Predicated region
        $region29: #{tpu_custom_call.1} parent=11 // pred_check
          %p353 = pneg %p153
        $region30: #{tpu_custom_call.1} parent=11 // pred_check_branch
          %355 = sbr.rel (%p353) target = $region32
        $region31: #{tpu_custom_call.1} parent=11 // pred_region
          _
        $region32: #{tpu_custom_call.1} parent=11 // pred_fallthru
          _
        // Predicated region
        $region33: #{tpu_custom_call.1} parent=11 // pred_check
          %p356 = pneg %p174
        $region34: #{tpu_custom_call.1} parent=11 // pred_check_branch
          %358 = sbr.rel (%p356) target = $region36
        $region35: #{tpu_custom_call.1} parent=11 // pred_region
          _
        $region36: #{tpu_custom_call.1} parent=11 // pred_fallthru
          _
        // Predicated region
        $region37: #{tpu_custom_call.1} parent=11 // pred_check
          %p359 = pneg %p195
        $region38: #{tpu_custom_call.1} parent=11 // pred_check_branch
          %361 = sbr.rel (%p359) target = $region40
        $region39: #{tpu_custom_call.1} parent=11 // pred_region
          _
        $region40: #{tpu_custom_call.1} parent=11 // pred_fallthru
          _
        // Predicated region
        $region41: #{tpu_custom_call.1} parent=11 // pred_check
          %p362 = pneg %p216
        $region42: #{tpu_custom_call.1} parent=11 // pred_check_branch
          %364 = sbr.rel (%p362) target = $region44
        $region43: #{tpu_custom_call.1} parent=11 // pred_region
          _
        $region44: #{tpu_custom_call.1} parent=11 // pred_fallthru
          _
        // Predicated region
        $region45: #{tpu_custom_call.1} parent=11 // pred_check
          %p365 = pneg %p237
        $region46: #{tpu_custom_call.1} parent=11 // pred_check_branch
          %367 = sbr.rel (%p365) target = $region48
        $region47: #{tpu_custom_call.1} parent=11 // pred_region
          _
        $region48: #{tpu_custom_call.1} parent=11 // pred_fallthru
          _
        // Predicated region
        $region49: #{tpu_custom_call.1} parent=11 // pred_check
          %p368 = pneg %p258
        $region50: #{tpu_custom_call.1} parent=11 // pred_check_branch
          %370 = sbr.rel (%p368) target = $region52
        $region51: #{tpu_custom_call.1} parent=11 // pred_region
          _
        $region52: #{tpu_custom_call.1} parent=11 // pred_fallthru
          _
        // Predicated region
        $region53: #{tpu_custom_call.1} parent=11 // pred_check
          %p371 = pneg %p279
        $region54: #{tpu_custom_call.1} parent=11 // pred_check_branch
          %373 = sbr.rel (%p371) target = $region56
        $region55: #{tpu_custom_call.1} parent=11 // pred_region
          _
        $region56: #{tpu_custom_call.1} parent=11 // pred_fallthru
          _
        // Predicated region
        $region57: #{tpu_custom_call.1} parent=11 // pred_check
          %p374 = pneg %p300
        $region58: #{tpu_custom_call.1} parent=11 // pred_check_branch
          %376 = sbr.rel (%p374) target = $region60
        $region59: #{tpu_custom_call.1} parent=11 // pred_region
          _
        $region60: #{tpu_custom_call.1} parent=11 // pred_fallthru
          _
      $region12: #{tpu_custom_call.1} parent=5 // pred_fallthru
        _
      %p377 = scmp.lt.s32.totalorder %s22, 2
      // Predicated region
      $region61: #{tpu_custom_call.1} parent=5 // pred_check
        %p378 = pneg %p377
      $region62: #{tpu_custom_call.1} parent=5 // pred_check_branch
        %380 = sbr.rel (%p378) target = $region64
      $region63: #{tpu_custom_call.1} parent=5 // pred_region
        // Predicated region
        $region65: #{tpu_custom_call.1} parent=63 // pred_check
          %p381 = pneg %p42
        $region66: #{tpu_custom_call.1} parent=63 // pred_check_branch
          %383 = sbr.rel (%p381) target = $region68
        $region67: #{tpu_custom_call.1} parent=63 // pred_region
          %s384 = smul.u32 16, %s22
          %p385 = scmp.lt.s32.totalorder %s384, 31
          %s386 = scalar_select %p385, %s384, 31
          %s387 = smul.addr %s386, 4
          %s388 = scalar_lea.vmem %s0, %s387
          %s389 = smul.u32 16, %s22
        $region68: #{tpu_custom_call.1} parent=63 // pred_fallthru
          _
      $region64: #{tpu_custom_call.1} parent=5 // pred_fallthru
        _
      %p390 = scmp.le.s32.totalorder 1, %s22
      %p391 = scmp.lt.s32.totalorder %s22, 3
      %p392 = pnand %p390, %p391
      %p393 = pneg %p392
      // Predicated region
      $region69: #{tpu_custom_call.1} parent=5 // pred_check
        _
      $region70: #{tpu_custom_call.1} parent=5 // pred_check_branch
        %395 = sbr.rel (%p392) target = $region72
      $region71: #{tpu_custom_call.1} parent=5 // pred_region
        %s396 = ssub.s32 %s22, 1
        %s397 = smul.u32 16, %s27
        %p398 = scmp.lt.s32.totalorder %s397, 31
        %s399 = scalar_select %p398, %s397, 31
        %s400 = smul.addr %s399, 4
        %s401 = scalar_lea.vmem %s0, %s400
        %p402 = pneg %p48
        %p403 = pneg %p45
        %p404 = pneg %p69
        %p405 = pneg %p66
        %p406 = pneg %p90
        %p407 = pneg %p87
        %p408 = pneg %p111
        %p409 = pneg %p108
        %p410 = pneg %p132
        %p411 = pneg %p129
        %p412 = pneg %p153
        %p413 = pneg %p150
        %p414 = pneg %p174
        %p415 = pneg %p171
        %p416 = pneg %p195
        %p417 = pneg %p192
        %p418 = pneg %p216
        %p419 = pneg %p213
        %p420 = pneg %p237
        %p421 = pneg %p234
        %p422 = pneg %p258
        %p423 = pneg %p255
        %p424 = pneg %p279
        %p425 = pneg %p276
        %p426 = pneg %p300
        %p427 = pneg %p297
        %p428 = pneg %p326
        %p429 = pneg %p323
        %s430 = sand.u32 %s313, 1
        %s431 = scalar_lea.sflag [#allocation3], %s430
        %s432 = sand.u32 %s313, 1
        %s433 = smul.addr %s432, 64
        %s434 = scalar_lea.vmem [#allocation2], %s433
        %s435 = smul.u32 16, %s27
        %p436 = scmp.lt.s32.totalorder %s435, 31
        %s437 = scalar_select %p436, %s435, 31
        %s438 = smul.addr %s437, 4
        %s439 = scalar_lea.vmem %s0, %s438
        %s440 = smul.u32 16, %s27
        %s441 = smul.u32 16, %s27
        %v443 = vld [vmem:[%s439] sm:$0xf]
        %v444 = vld [vmem:[%s439 + $0x4] sm:$0xf]
        %v445 = vld [vmem:[%s439 + $0x8] sm:$0xf]
        %v446 = vld [vmem:[%s439 + $0xc] sm:$0xf]
        %v447 = vld [vmem:[%s439 + $0x10] sm:$0xf]
        %v448 = vld [vmem:[%s439 + $0x14] sm:$0xf]
        %v449 = vld [vmem:[%s439 + $0x18] sm:$0xf]
        %v450 = vld [vmem:[%s439 + $0x1c] sm:$0xf]
        %v451 = vld [vmem:[%s439 + $0x20] sm:$0xf]
        %v452 = vld [vmem:[%s439 + $0x24] sm:$0xf]
        %v453 = vld [vmem:[%s439 + $0x28] sm:$0xf]
        %v454 = vld [vmem:[%s439 + $0x2c] sm:$0xf]
        %v455 = vld [vmem:[%s439 + $0x30] sm:$0xf]
        %v456 = vld [vmem:[%s439 + $0x34] sm:$0xf]
        %v457 = vld [vmem:[%s439 + $0x38] sm:$0xf]
        %v458 = vld [vmem:[%s439 + $0x3c] sm:$0xf]
        %v459 = vld [vmem:[%s1] sm:$0xf]
        %v460 = vld [vmem:[%s1 + $0x4] sm:$0xf]
        %v461 = vld [vmem:[%s2] sm:$0x1]
        %v463 = vlaneseq
        %v464 = vshrl.u32 %v463, 7
        %v465 = vsub.s32 0, %v464
        %v466 = vrot.slane %v461, %v465
        %v484 = vunpack.c.l.b16 %v443
        %v485 = vunpack.c.l.b16 %v444
        %v486 = vunpack.c.l.b16 %v445
        %v487 = vunpack.c.l.b16 %v446
        %v488 = vunpack.c.l.b16 %v447
        %v489 = vunpack.c.l.b16 %v448
        %v490 = vunpack.c.l.b16 %v449
        %v491 = vunpack.c.l.b16 %v450
        %v492 = vunpack.c.l.b16 %v451
        %v493 = vunpack.c.l.b16 %v452
        %v494 = vunpack.c.l.b16 %v453
        %v495 = vunpack.c.l.b16 %v454
        %v496 = vunpack.c.l.b16 %v455
        %v497 = vunpack.c.l.b16 %v456
        %v498 = vunpack.c.l.b16 %v457
        %v499 = vunpack.c.l.b16 %v458
        %v500 = vpack.c.b16 %v485, %v484
        %v501 = vpack.c.b16 %v487, %v486
        %v502 = vpack.c.b16 %v489, %v488
        %v503 = vpack.c.b16 %v491, %v490
        %v504 = vpack.c.b16 %v493, %v492
        %v505 = vpack.c.b16 %v495, %v494
        %v506 = vpack.c.b16 %v497, %v496
        %v507 = vpack.c.b16 %v499, %v498
        %v510 = vunpack.c.l.b16 %v459
        %v511 = vunpack.c.l.b16 %v460
        %v512 = vpack.c.b16 %v511, %v510
        %vm513 = vcmask 121856
        %v515 = vsel %vm513, %v500, 0
        %v518 = vsel %vm513, %v501, 0
        %v521 = vsel %vm513, %v502, 0
        %v524 = vsel %vm513, %v503, 0
        %v527 = vsel %vm513, %v504, 0
        %v530 = vsel %vm513, %v505, 0
        %v533 = vsel %vm513, %v506, 0
        %v536 = vsel %vm513, %v507, 0
        %vm538 = vcmask 1046528
        %vm539 = vcmask 1047552
        %v540 = vsel %vm538, 4294967295, 65535
        %v541 = vsel %vm539, %v540, 0
        %v543 = vand.u32 %v512, %v541
        %545 = vmatprep.subr.bf16.mxu0 0
        %546 = vmatpush1.bf16.msra.mxu0 0
        %547 = vmatprep.subr.bf16.mxu0 0
        %548 = vmatpush1.bf16.msra.mxu0 0
        %549 = vmatprep.subr.bf16.mxu0 0
        %550 = vmatpush1.bf16.msra.mxu0 0
        %551 = vmatprep.subr.bf16.mxu0 0
        %552 = vmatpush1.bf16.msra.mxu0 0
        %553 = vmatprep.subr.bf16.mxu0 0
        %554 = vmatpush1.bf16.msra.mxu0 0
        %555 = vmatprep.subr.bf16.mxu0 0
        %556 = vmatpush1.bf16.msra.mxu0 0
        %557 = vmatprep.subr.bf16.mxu0 0
        %558 = vmatpush1.bf16.msra.mxu0 0
        %559 = vmatprep.subr.bf16.mxu0 0
        %560 = vmatpush1.bf16.msra.mxu0 %v543
        %561 = vmatprep.subr.bf16.mxu0 0
        %562 = vmatpush2.bf16.msra.mxu0 0
        %563 = vmatprep.subr.bf16.mxu0 0
        %564 = vmatpush2.bf16.msra.mxu0 0
        %565 = vmatprep.subr.bf16.mxu0 0
        %566 = vmatpush2.bf16.msra.mxu0 0
        %567 = vmatprep.subr.bf16.mxu0 0
        %568 = vmatpush2.bf16.msra.mxu0 0
        %569 = vmatprep.subr.bf16.mxu0 0
        %570 = vmatpush2.bf16.msra.mxu0 0
        %571 = vmatprep.subr.bf16.mxu0 0
        %572 = vmatpush2.bf16.msra.mxu0 0
        %573 = vmatprep.subr.bf16.mxu0 0
        %574 = vmatpush2.bf16.msra.mxu0 0
        %575 = vmatprep.subr.bf16.mxu0 0
        %576 = vmatpush2.bf16.msra.mxu0 0
        %577 = vmatprep.mubr.bf16.mxu0 0
        %578 = vmatmul.mubr.bf16.gmra.mxu0 %v515
        %v579 = vpop.f32.mrf.mxu0
        %v580 = vadd.f32 %v466, %v579
        %v581 = vpop.f32.mrf.mxu0
        %v582 = vpop.f32.mrf.mxu0
        %v583 = vadd.f32 %v466, %v582
        %v584 = vpop.f32.mrf.mxu0
        %585 = vmatprep.mubr.bf16.mxu0 0
        %586 = vmatmul.mubr.bf16.gmra.mxu0 %v518
        %v587 = vpop.f32.mrf.mxu0
        %v588 = vadd.f32 %v466, %v587
        %v589 = vpop.f32.mrf.mxu0
        %v590 = vpop.f32.mrf.mxu0
        %v591 = vadd.f32 %v466, %v590
        %v592 = vpop.f32.mrf.mxu0
        %593 = vmatprep.mubr.bf16.mxu0 0
        %594 = vmatmul.mubr.bf16.gmra.mxu0 %v521
        %v595 = vpop.f32.mrf.mxu0
        %v596 = vadd.f32 %v466, %v595
        %v597 = vpop.f32.mrf.mxu0
        %v598 = vpop.f32.mrf.mxu0
        %v599 = vadd.f32 %v466, %v598
        %v600 = vpop.f32.mrf.mxu0
        %601 = vmatprep.mubr.bf16.mxu0 0
        %602 = vmatmul.mubr.bf16.gmra.mxu0 %v524
        %v603 = vpop.f32.mrf.mxu0
        %v604 = vadd.f32 %v466, %v603
        %v605 = vpop.f32.mrf.mxu0
        %v606 = vpop.f32.mrf.mxu0
        %v607 = vadd.f32 %v466, %v606
        %v608 = vpop.f32.mrf.mxu0
        %609 = vmatprep.mubr.bf16.mxu0 0
        %610 = vmatmul.mubr.bf16.gmra.mxu0 %v527
        %v611 = vpop.f32.mrf.mxu0
        %v612 = vadd.f32 %v466, %v611
        %v613 = vpop.f32.mrf.mxu0
        %v614 = vpop.f32.mrf.mxu0
        %v615 = vadd.f32 %v466, %v614
        %v616 = vpop.f32.mrf.mxu0
        %617 = vmatprep.mubr.bf16.mxu0 0
        %618 = vmatmul.mubr.bf16.gmra.mxu0 %v530
        %v619 = vpop.f32.mrf.mxu0
        %v620 = vadd.f32 %v466, %v619
        %v621 = vpop.f32.mrf.mxu0
        %v622 = vpop.f32.mrf.mxu0
        %v623 = vadd.f32 %v466, %v622
        %v624 = vpop.f32.mrf.mxu0
        %625 = vmatprep.mubr.bf16.mxu0 0
        %626 = vmatmul.mubr.bf16.gmra.mxu0 %v533
        %v627 = vpop.f32.mrf.mxu0
        %v628 = vadd.f32 %v466, %v627
        %v629 = vpop.f32.mrf.mxu0
        %v630 = vpop.f32.mrf.mxu0
        %v631 = vadd.f32 %v466, %v630
        %v632 = vpop.f32.mrf.mxu0
        %633 = vmatprep.mubr.bf16.mxu0 0
        %634 = vmatmul.mubr.bf16.gmra.mxu0 %v536
        %v635 = vpop.f32.mrf.mxu0
        %v636 = vadd.f32 %v466, %v635
        %v637 = vpop.f32.mrf.mxu0
        %v638 = vpop.f32.mrf.mxu0
        %v639 = vadd.f32 %v466, %v638
        %v640 = vpop.f32.mrf.mxu0
        %641 = vdwg.mxu0
        %v642 = vmax.f32 %v580, 0.0
        %v643 = vmax.f32 %v583, 0.0
        %v644 = vmax.f32 %v588, 0.0
        %v645 = vmax.f32 %v591, 0.0
        %v646 = vmax.f32 %v596, 0.0
        %v647 = vmax.f32 %v599, 0.0
        %v648 = vmax.f32 %v604, 0.0
        %v649 = vmax.f32 %v607, 0.0
        %v650 = vmax.f32 %v612, 0.0
        %v651 = vmax.f32 %v615, 0.0
        %v652 = vmax.f32 %v620, 0.0
        %v653 = vmax.f32 %v623, 0.0
        %v654 = vmax.f32 %v628, 0.0
        %v655 = vmax.f32 %v631, 0.0
        %v656 = vmax.f32 %v636, 0.0
        %v657 = vmax.f32 %v639, 0.0
        %v658 = vpack.c.bf16 %v643, %v642
        %v659 = vpack.c.bf16 %v645, %v644
        %v660 = vpack.c.bf16 %v647, %v646
        %v661 = vpack.c.bf16 %v649, %v648
        %v662 = vpack.c.bf16 %v651, %v650
        %v663 = vpack.c.bf16 %v653, %v652
        %v664 = vpack.c.bf16 %v655, %v654
        %v665 = vpack.c.bf16 %v657, %v656
        %v666 = vld [vmem:[%s3] sm:$0xf]
        %v667 = vld [vmem:[%s3 + $0x4] sm:$0xf]
        %v668 = vld [vmem:[%s3 + $0x8] sm:$0xf]
        %v669 = vld [vmem:[%s3 + $0xc] sm:$0xf]
        %v670 = vld [vmem:[%s3 + $0x10] sm:$0xf]
        %v671 = vld [vmem:[%s3 + $0x14] sm:$0xf]
        %v672 = vld [vmem:[%s4] sm:$0x1]
        %v674 = vlaneseq
        %v675 = vshrl.u32 %v674, 7
        %v676 = vsub.s32 0, %v675
        %v677 = vrot.slane %v672, %v676
        %v685 = vunpack.c.l.b16 %v666
        %v686 = vunpack.c.l.b16 %v667
        %v687 = vunpack.c.l.b16 %v668
        %v688 = vunpack.c.l.b16 %v669
        %v689 = vunpack.c.l.b16 %v670
        %v690 = vunpack.c.l.b16 %v671
        %v691 = vpack.c.b16 %v686, %v685
        %v692 = vpack.c.b16 %v688, %v687
        %v693 = vpack.c.b16 %v690, %v689
        %vm697 = vcmask 392192
        %v699 = vsel %vm697, %v658, 0
        %v702 = vsel %vm697, %v659, 0
        %v705 = vsel %vm697, %v660, 0
        %v708 = vsel %vm697, %v661, 0
        %v711 = vsel %vm697, %v662, 0
        %v714 = vsel %vm697, %v663, 0
        %v717 = vsel %vm697, %v664, 0
        %v720 = vsel %vm697, %v665, 0
        %722 = vmatprep.subr.bf16.mxu0 0
        %723 = vmatpush1.bf16.msra.mxu0 0
        %724 = vmatprep.subr.bf16.mxu0 0
        %725 = vmatpush1.bf16.msra.mxu0 0
        %726 = vmatprep.subr.bf16.mxu0 0
        %727 = vmatpush1.bf16.msra.mxu0 0
        %728 = vmatprep.subr.bf16.mxu0 0
        %729 = vmatpush1.bf16.msra.mxu0 0
        %730 = vmatprep.subr.bf16.mxu0 0
        %731 = vmatpush1.bf16.msra.mxu0 0
        %732 = vmatprep.subr.bf16.mxu0 0
        %733 = vmatpush1.bf16.msra.mxu0 %v693
        %734 = vmatprep.subr.bf16.mxu0 0
        %735 = vmatpush1.bf16.msra.mxu0 %v692
        %736 = vmatprep.subr.bf16.mxu0 0
        %737 = vmatpush1.bf16.msra.mxu0 %v691
        %738 = vmatprep.subr.bf16.mxu0 0
        %739 = vmatpush2.bf16.msra.mxu0 0
        %740 = vmatprep.subr.bf16.mxu0 0
        %741 = vmatpush2.bf16.msra.mxu0 0
        %742 = vmatprep.subr.bf16.mxu0 0
        %743 = vmatpush2.bf16.msra.mxu0 0
        %744 = vmatprep.subr.bf16.mxu0 0
        %745 = vmatpush2.bf16.msra.mxu0 0
        %746 = vmatprep.subr.bf16.mxu0 0
        %747 = vmatpush2.bf16.msra.mxu0 0
        %748 = vmatprep.subr.bf16.mxu0 0
        %749 = vmatpush2.bf16.msra.mxu0 0
        %750 = vmatprep.subr.bf16.mxu0 0
        %751 = vmatpush2.bf16.msra.mxu0 0
        %752 = vmatprep.subr.bf16.mxu0 0
        %753 = vmatpush2.bf16.msra.mxu0 0
        %754 = vmatprep.mubr.bf16.mxu0 0
        %755 = vmatmul.mubr.bf16.gmra.mxu0 %v699
        %v756 = vpop.f32.mrf.mxu0
        %v757 = vadd.f32 %v677, %v756
        %v758 = vpop.f32.mrf.mxu0
        %v759 = vpop.f32.mrf.mxu0
        %v760 = vadd.f32 %v677, %v759
        %v761 = vpop.f32.mrf.mxu0
        %762 = vmatprep.mubr.bf16.mxu0 0
        %763 = vmatmul.mubr.bf16.gmra.mxu0 %v702
        %v764 = vpop.f32.mrf.mxu0
        %v765 = vadd.f32 %v677, %v764
        %v766 = vpop.f32.mrf.mxu0
        %v767 = vpop.f32.mrf.mxu0
        %v768 = vadd.f32 %v677, %v767
        %v769 = vpop.f32.mrf.mxu0
        %770 = vmatprep.mubr.bf16.mxu0 0
        %771 = vmatmul.mubr.bf16.gmra.mxu0 %v705
        %v772 = vpop.f32.mrf.mxu0
        %v773 = vadd.f32 %v677, %v772
        %v774 = vpop.f32.mrf.mxu0
        %v775 = vpop.f32.mrf.mxu0
        %v776 = vadd.f32 %v677, %v775
        %v777 = vpop.f32.mrf.mxu0
        %778 = vmatprep.mubr.bf16.mxu0 0
        %779 = vmatmul.mubr.bf16.gmra.mxu0 %v708
        %v780 = vpop.f32.mrf.mxu0
        %v781 = vadd.f32 %v677, %v780
        %v782 = vpop.f32.mrf.mxu0
        %v783 = vpop.f32.mrf.mxu0
        %v784 = vadd.f32 %v677, %v783
        %v785 = vpop.f32.mrf.mxu0
        %786 = vmatprep.mubr.bf16.mxu0 0
        %787 = vmatmul.mubr.bf16.gmra.mxu0 %v711
        %v788 = vpop.f32.mrf.mxu0
        %v789 = vadd.f32 %v677, %v788
        %v790 = vpop.f32.mrf.mxu0
        %v791 = vpop.f32.mrf.mxu0
        %v792 = vadd.f32 %v677, %v791
        %v793 = vpop.f32.mrf.mxu0
        %794 = vmatprep.mubr.bf16.mxu0 0
        %795 = vmatmul.mubr.bf16.gmra.mxu0 %v714
        %v796 = vpop.f32.mrf.mxu0
        %v797 = vadd.f32 %v677, %v796
        %v798 = vpop.f32.mrf.mxu0
        %v799 = vpop.f32.mrf.mxu0
        %v800 = vadd.f32 %v677, %v799
        %v801 = vpop.f32.mrf.mxu0
        %802 = vmatprep.mubr.bf16.mxu0 0
        %803 = vmatmul.mubr.bf16.gmra.mxu0 %v717
        %v804 = vpop.f32.mrf.mxu0
        %v805 = vadd.f32 %v677, %v804
        %v806 = vpop.f32.mrf.mxu0
        %v807 = vpop.f32.mrf.mxu0
        %v808 = vadd.f32 %v677, %v807
        %v809 = vpop.f32.mrf.mxu0
        %810 = vmatprep.mubr.bf16.mxu0 0
        %811 = vmatmul.mubr.bf16.gmra.mxu0 %v720
        %v812 = vpop.f32.mrf.mxu0
        %v813 = vadd.f32 %v677, %v812
        %v814 = vpop.f32.mrf.mxu0
        %v815 = vpop.f32.mrf.mxu0
        %v816 = vadd.f32 %v677, %v815
        %v817 = vpop.f32.mrf.mxu0
        %818 = vdwg.mxu0
        %v819 = vmax.f32 %v757, 0.0
        %v820 = vmax.f32 %v760, 0.0
        %v821 = vmax.f32 %v765, 0.0
        %v822 = vmax.f32 %v768, 0.0
        %v823 = vmax.f32 %v773, 0.0
        %v824 = vmax.f32 %v776, 0.0
        %v825 = vmax.f32 %v781, 0.0
        %v826 = vmax.f32 %v784, 0.0
        %v827 = vmax.f32 %v789, 0.0
        %v828 = vmax.f32 %v792, 0.0
        %v829 = vmax.f32 %v797, 0.0
        %v830 = vmax.f32 %v800, 0.0
        %v831 = vmax.f32 %v805, 0.0
        %v832 = vmax.f32 %v808, 0.0
        %v833 = vmax.f32 %v813, 0.0
        %v834 = vmax.f32 %v816, 0.0
        %v835 = vpack.c.bf16 %v820, %v819
        %v836 = vpack.c.bf16 %v822, %v821
        %v837 = vpack.c.bf16 %v824, %v823
        %v838 = vpack.c.bf16 %v826, %v825
        %v839 = vpack.c.bf16 %v828, %v827
        %v840 = vpack.c.bf16 %v830, %v829
        %v841 = vpack.c.bf16 %v832, %v831
        %v842 = vpack.c.bf16 %v834, %v833
        %v843 = vld [vmem:[%s5] sm:$0xf]
        %v844 = vld [vmem:[%s5 + $0x4] sm:$0xf]
        %v845 = vld [vmem:[%s5 + $0x8] sm:$0xf]
        %v846 = vld [vmem:[%s5 + $0xc] sm:$0xf]
        %v847 = vld [vmem:[%s6] sm:$0x1]
        %v849 = vlaneseq
        %v850 = vshrl.u32 %v849, 7
        %v851 = vsub.s32 0, %v850
        %v852 = vrot.slane %v847, %v851
        %v858 = vunpack.c.l.b16 %v843
        %v859 = vunpack.c.l.b16 %v844
        %v860 = vunpack.c.l.b16 %v845
        %v861 = vunpack.c.l.b16 %v846
        %v862 = vpack.c.b16 %v859, %v858
        %v863 = vpack.c.b16 %v861, %v860
        %vm866 = vcmask 261120
        %v868 = vsel %vm866, %v835, 0
        %v871 = vsel %vm866, %v836, 0
        %v874 = vsel %vm866, %v837, 0
        %v877 = vsel %vm866, %v838, 0
        %v880 = vsel %vm866, %v839, 0
        %v883 = vsel %vm866, %v840, 0
        %v886 = vsel %vm866, %v841, 0
        %v889 = vsel %vm866, %v842, 0
        %891 = vmatprep.subr.bf16.mxu0 0
        %892 = vmatpush1.bf16.msra.mxu0 0
        %893 = vmatprep.subr.bf16.mxu0 0
        %894 = vmatpush1.bf16.msra.mxu0 0
        %895 = vmatprep.subr.bf16.mxu0 0
        %896 = vmatpush1.bf16.msra.mxu0 0
        %897 = vmatprep.subr.bf16.mxu0 0
        %898 = vmatpush1.bf16.msra.mxu0 0
        %899 = vmatprep.subr.bf16.mxu0 0
        %900 = vmatpush1.bf16.msra.mxu0 0
        %901 = vmatprep.subr.bf16.mxu0 0
        %902 = vmatpush1.bf16.msra.mxu0 0
        %903 = vmatprep.subr.bf16.mxu0 0
        %904 = vmatpush1.bf16.msra.mxu0 %v863
        %905 = vmatprep.subr.bf16.mxu0 0
        %906 = vmatpush1.bf16.msra.mxu0 %v862
        %907 = vmatprep.subr.bf16.mxu0 0
        %908 = vmatpush2.bf16.msra.mxu0 0
        %909 = vmatprep.subr.bf16.mxu0 0
        %910 = vmatpush2.bf16.msra.mxu0 0
        %911 = vmatprep.subr.bf16.mxu0 0
        %912 = vmatpush2.bf16.msra.mxu0 0
        %913 = vmatprep.subr.bf16.mxu0 0
        %914 = vmatpush2.bf16.msra.mxu0 0
        %915 = vmatprep.subr.bf16.mxu0 0
        %916 = vmatpush2.bf16.msra.mxu0 0
        %917 = vmatprep.subr.bf16.mxu0 0
        %918 = vmatpush2.bf16.msra.mxu0 0
        %919 = vmatprep.subr.bf16.mxu0 0
        %920 = vmatpush2.bf16.msra.mxu0 0
        %921 = vmatprep.subr.bf16.mxu0 0
        %922 = vmatpush2.bf16.msra.mxu0 0
        %923 = vmatprep.mubr.bf16.mxu0 0
        %924 = vmatmul.mubr.bf16.gmra.mxu0 %v868
        %v925 = vpop.f32.mrf.mxu0
        %v926 = vadd.f32 %v852, %v925
        %v927 = vpop.f32.mrf.mxu0
        %v928 = vpop.f32.mrf.mxu0
        %v929 = vadd.f32 %v852, %v928
        %v930 = vpop.f32.mrf.mxu0
        %931 = vmatprep.mubr.bf16.mxu0 0
        %932 = vmatmul.mubr.bf16.gmra.mxu0 %v871
        %v933 = vpop.f32.mrf.mxu0
        %v934 = vadd.f32 %v852, %v933
        %v935 = vpop.f32.mrf.mxu0
        %v936 = vpop.f32.mrf.mxu0
        %v937 = vadd.f32 %v852, %v936
        %v938 = vpop.f32.mrf.mxu0
        %939 = vmatprep.mubr.bf16.mxu0 0
        %940 = vmatmul.mubr.bf16.gmra.mxu0 %v874
        %v941 = vpop.f32.mrf.mxu0
        %v942 = vadd.f32 %v852, %v941
        %v943 = vpop.f32.mrf.mxu0
        %v944 = vpop.f32.mrf.mxu0
        %v945 = vadd.f32 %v852, %v944
        %v946 = vpop.f32.mrf.mxu0
        %947 = vmatprep.mubr.bf16.mxu0 0
        %948 = vmatmul.mubr.bf16.gmra.mxu0 %v877
        %v949 = vpop.f32.mrf.mxu0
        %v950 = vadd.f32 %v852, %v949
        %v951 = vpop.f32.mrf.mxu0
        %v952 = vpop.f32.mrf.mxu0
        %v953 = vadd.f32 %v852, %v952
        %v954 = vpop.f32.mrf.mxu0
        %955 = vmatprep.mubr.bf16.mxu0 0
        %956 = vmatmul.mubr.bf16.gmra.mxu0 %v880
        %v957 = vpop.f32.mrf.mxu0
        %v958 = vadd.f32 %v852, %v957
        %v959 = vpop.f32.mrf.mxu0
        %v960 = vpop.f32.mrf.mxu0
        %v961 = vadd.f32 %v852, %v960
        %v962 = vpop.f32.mrf.mxu0
        %963 = vmatprep.mubr.bf16.mxu0 0
        %964 = vmatmul.mubr.bf16.gmra.mxu0 %v883
        %v965 = vpop.f32.mrf.mxu0
        %v966 = vadd.f32 %v852, %v965
        %v967 = vpop.f32.mrf.mxu0
        %v968 = vpop.f32.mrf.mxu0
        %v969 = vadd.f32 %v852, %v968
        %v970 = vpop.f32.mrf.mxu0
        %971 = vmatprep.mubr.bf16.mxu0 0
        %972 = vmatmul.mubr.bf16.gmra.mxu0 %v886
        %v973 = vpop.f32.mrf.mxu0
        %v974 = vadd.f32 %v852, %v973
        %v975 = vpop.f32.mrf.mxu0
        %v976 = vpop.f32.mrf.mxu0
        %v977 = vadd.f32 %v852, %v976
        %v978 = vpop.f32.mrf.mxu0
        %979 = vmatprep.mubr.bf16.mxu0 0
        %980 = vmatmul.mubr.bf16.gmra.mxu0 %v889
        %v981 = vpop.f32.mrf.mxu0
        %v982 = vadd.f32 %v852, %v981
        %v983 = vpop.f32.mrf.mxu0
        %v984 = vpop.f32.mrf.mxu0
        %v985 = vadd.f32 %v852, %v984
        %v986 = vpop.f32.mrf.mxu0
        %987 = vdwg.mxu0
        %v988 = vpack.c.bf16 %v929, %v926
        %v989 = vpack.c.bf16 %v937, %v934
        %v990 = vpack.c.bf16 %v945, %v942
        %v991 = vpack.c.bf16 %v953, %v950
        %v992 = vpack.c.bf16 %v961, %v958
        %v993 = vpack.c.bf16 %v969, %v966
        %v994 = vpack.c.bf16 %v977, %v974
        %v995 = vpack.c.bf16 %v985, %v982
        %v996 = vld [vmem:[%s7] sm:$0xf]
        %v997 = vld [vmem:[%s7 + $0x4] sm:$0xf]
        %v998 = vld [vmem:[%s8] sm:$0x1]
        %v1000 = vlaneseq
        %v1001 = vshrl.u32 %v1000, 7
        %v1002 = vsub.s32 0, %v1001
        %v1003 = vrot.slane %v998, %v1002
        %v1007 = vunpack.c.l.b16 %v996
        %v1008 = vunpack.c.l.b16 %v997
        %v1009 = vpack.c.b16 %v1008, %v1007
        %vm1011 = vcmask 130048
        %v1013 = vsel %vm1011, %v988, 0
        %v1016 = vsel %vm1011, %v989, 0
        %v1019 = vsel %vm1011, %v990, 0
        %v1022 = vsel %vm1011, %v991, 0
        %v1025 = vsel %vm1011, %v992, 0
        %v1028 = vsel %vm1011, %v993, 0
        %v1031 = vsel %vm1011, %v994, 0
        %v1034 = vsel %vm1011, %v995, 0
        %1036 = vmatprep.subr.bf16.mxu0 0
        %1037 = vmatpush1.bf16.msra.mxu0 0
        %1038 = vmatprep.subr.bf16.mxu0 0
        %1039 = vmatpush1.bf16.msra.mxu0 0
        %1040 = vmatprep.subr.bf16.mxu0 0
        %1041 = vmatpush1.bf16.msra.mxu0 0
        %1042 = vmatprep.subr.bf16.mxu0 0
        %1043 = vmatpush1.bf16.msra.mxu0 0
        %1044 = vmatprep.subr.bf16.mxu0 0
        %1045 = vmatpush1.bf16.msra.mxu0 0
        %1046 = vmatprep.subr.bf16.mxu0 0
        %1047 = vmatpush1.bf16.msra.mxu0 0
        %1048 = vmatprep.subr.bf16.mxu0 0
        %1049 = vmatpush1.bf16.msra.mxu0 0
        %1050 = vmatprep.subr.bf16.mxu0 0
        %1051 = vmatpush1.bf16.msra.mxu0 %v1009
        %1052 = vmatprep.subr.bf16.mxu0 0
        %1053 = vmatpush2.bf16.msra.mxu0 0
        %1054 = vmatprep.subr.bf16.mxu0 0
        %1055 = vmatpush2.bf16.msra.mxu0 0
        %1056 = vmatprep.subr.bf16.mxu0 0
        %1057 = vmatpush2.bf16.msra.mxu0 0
        %1058 = vmatprep.subr.bf16.mxu0 0
        %1059 = vmatpush2.bf16.msra.mxu0 0
        %1060 = vmatprep.subr.bf16.mxu0 0
        %1061 = vmatpush2.bf16.msra.mxu0 0
        %1062 = vmatprep.subr.bf16.mxu0 0
        %1063 = vmatpush2.bf16.msra.mxu0 0
        %1064 = vmatprep.subr.bf16.mxu0 0
        %1065 = vmatpush2.bf16.msra.mxu0 0
        %1066 = vmatprep.subr.bf16.mxu0 0
        %1067 = vmatpush2.bf16.msra.mxu0 0
        %1068 = vmatprep.mubr.bf16.mxu0 0
        %1069 = vmatmul.mubr.bf16.gmra.mxu0 %v1013
        %v1070 = vpop.f32.mrf.mxu0
        %v1071 = vadd.f32 %v1003, %v1070
        %v1072 = vpop.f32.mrf.mxu0
        %v1073 = vpop.f32.mrf.mxu0
        %v1074 = vadd.f32 %v1003, %v1073
        %v1075 = vpop.f32.mrf.mxu0
        %1076 = vmatprep.mubr.bf16.mxu0 0
        %1077 = vmatmul.mubr.bf16.gmra.mxu0 %v1016
        %v1078 = vpop.f32.mrf.mxu0
        %v1079 = vadd.f32 %v1003, %v1078
        %v1080 = vpop.f32.mrf.mxu0
        %v1081 = vpop.f32.mrf.mxu0
        %v1082 = vadd.f32 %v1003, %v1081
        %v1083 = vpop.f32.mrf.mxu0
        %1084 = vmatprep.mubr.bf16.mxu0 0
        %1085 = vmatmul.mubr.bf16.gmra.mxu0 %v1019
        %v1086 = vpop.f32.mrf.mxu0
        %v1087 = vadd.f32 %v1003, %v1086
        %v1088 = vpop.f32.mrf.mxu0
        %v1089 = vpop.f32.mrf.mxu0
        %v1090 = vadd.f32 %v1003, %v1089
        %v1091 = vpop.f32.mrf.mxu0
        %1092 = vmatprep.mubr.bf16.mxu0 0
        %1093 = vmatmul.mubr.bf16.gmra.mxu0 %v1022
        %v1094 = vpop.f32.mrf.mxu0
        %v1095 = vadd.f32 %v1003, %v1094
        %v1096 = vpop.f32.mrf.mxu0
        %v1097 = vpop.f32.mrf.mxu0
        %v1098 = vadd.f32 %v1003, %v1097
        %v1099 = vpop.f32.mrf.mxu0
        %1100 = vmatprep.mubr.bf16.mxu0 0
        %1101 = vmatmul.mubr.bf16.gmra.mxu0 %v1025
        %v1102 = vpop.f32.mrf.mxu0
        %v1103 = vadd.f32 %v1003, %v1102
        %v1104 = vpop.f32.mrf.mxu0
        %v1105 = vpop.f32.mrf.mxu0
        %v1106 = vadd.f32 %v1003, %v1105
        %v1107 = vpop.f32.mrf.mxu0
        %1108 = vmatprep.mubr.bf16.mxu0 0
        %1109 = vmatmul.mubr.bf16.gmra.mxu0 %v1028
        %v1110 = vpop.f32.mrf.mxu0
        %v1111 = vadd.f32 %v1003, %v1110
        %v1112 = vpop.f32.mrf.mxu0
        %v1113 = vpop.f32.mrf.mxu0
        %v1114 = vadd.f32 %v1003, %v1113
        %v1115 = vpop.f32.mrf.mxu0
        %1116 = vmatprep.mubr.bf16.mxu0 0
        %1117 = vmatmul.mubr.bf16.gmra.mxu0 %v1031
        %v1118 = vpop.f32.mrf.mxu0
        %v1119 = vadd.f32 %v1003, %v1118
        %v1120 = vpop.f32.mrf.mxu0
        %v1121 = vpop.f32.mrf.mxu0
        %v1122 = vadd.f32 %v1003, %v1121
        %v1123 = vpop.f32.mrf.mxu0
        %1124 = vmatprep.mubr.bf16.mxu0 0
        %1125 = vmatmul.mubr.bf16.gmra.mxu0 %v1034
        %v1126 = vpop.f32.mrf.mxu0
        %v1127 = vadd.f32 %v1003, %v1126
        %v1128 = vpop.f32.mrf.mxu0
        %v1129 = vpop.f32.mrf.mxu0
        %v1130 = vadd.f32 %v1003, %v1129
        %v1131 = vpop.f32.mrf.mxu0
        %1132 = vdwg.mxu0
        %v1133 = vmax.f32 %v1071, 0.0
        %v1134 = vmax.f32 %v1074, 0.0
        %v1135 = vmax.f32 %v1079, 0.0
        %v1136 = vmax.f32 %v1082, 0.0
        %v1137 = vmax.f32 %v1087, 0.0
        %v1138 = vmax.f32 %v1090, 0.0
        %v1139 = vmax.f32 %v1095, 0.0
        %v1140 = vmax.f32 %v1098, 0.0
        %v1141 = vmax.f32 %v1103, 0.0
        %v1142 = vmax.f32 %v1106, 0.0
        %v1143 = vmax.f32 %v1111, 0.0
        %v1144 = vmax.f32 %v1114, 0.0
        %v1145 = vmax.f32 %v1119, 0.0
        %v1146 = vmax.f32 %v1122, 0.0
        %v1147 = vmax.f32 %v1127, 0.0
        %v1148 = vmax.f32 %v1130, 0.0
        %v1149 = vpack.c.bf16 %v1134, %v1133
        %v1150 = vpack.c.bf16 %v1136, %v1135
        %v1151 = vpack.c.bf16 %v1138, %v1137
        %v1152 = vpack.c.bf16 %v1140, %v1139
        %v1153 = vpack.c.bf16 %v1142, %v1141
        %v1154 = vpack.c.bf16 %v1144, %v1143
        %v1155 = vpack.c.bf16 %v1146, %v1145
        %v1156 = vpack.c.bf16 %v1148, %v1147
        %v1157 = vld [vmem:[%s9] sm:$0xf]
        %v1158 = vld [vmem:[%s9 + $0x4] sm:$0xf]
        %v1159 = vld [vmem:[%s9 + $0x8] sm:$0xf]
        %v1160 = vld [vmem:[%s9 + $0xc] sm:$0xf]
        %v1161 = vld [vmem:[%s10] sm:$0x1]
        %v1163 = vlaneseq
        %v1164 = vshrl.u32 %v1163, 7
        %v1165 = vsub.s32 0, %v1164
        %v1166 = vrot.slane %v1161, %v1165
        %v1172 = vunpack.c.l.b16 %v1157
        %v1173 = vunpack.c.l.b16 %v1158
        %v1174 = vunpack.c.l.b16 %v1159
        %v1175 = vunpack.c.l.b16 %v1160
        %v1176 = vpack.c.b16 %v1173, %v1172
        %v1177 = vpack.c.b16 %v1175, %v1174
        %v1181 = vsel %vm866, %v1149, 0
        %v1184 = vsel %vm866, %v1150, 0
        %v1187 = vsel %vm866, %v1151, 0
        %v1190 = vsel %vm866, %v1152, 0
        %v1193 = vsel %vm866, %v1153, 0
        %v1196 = vsel %vm866, %v1154, 0
        %v1199 = vsel %vm866, %v1155, 0
        %v1202 = vsel %vm866, %v1156, 0
        %1204 = vmatprep.subr.bf16.mxu0 0
        %1205 = vmatpush1.bf16.msra.mxu0 0
        %1206 = vmatprep.subr.bf16.mxu0 0
        %1207 = vmatpush1.bf16.msra.mxu0 0
        %1208 = vmatprep.subr.bf16.mxu0 0
        %1209 = vmatpush1.bf16.msra.mxu0 0
        %1210 = vmatprep.subr.bf16.mxu0 0
        %1211 = vmatpush1.bf16.msra.mxu0 0
        %1212 = vmatprep.subr.bf16.mxu0 0
        %1213 = vmatpush1.bf16.msra.mxu0 0
        %1214 = vmatprep.subr.bf16.mxu0 0
        %1215 = vmatpush1.bf16.msra.mxu0 0
        %1216 = vmatprep.subr.bf16.mxu0 0
        %1217 = vmatpush1.bf16.msra.mxu0 %v1177
        %1218 = vmatprep.subr.bf16.mxu0 0
        %1219 = vmatpush1.bf16.msra.mxu0 %v1176
        %1220 = vmatprep.subr.bf16.mxu0 0
        %1221 = vmatpush2.bf16.msra.mxu0 0
        %1222 = vmatprep.subr.bf16.mxu0 0
        %1223 = vmatpush2.bf16.msra.mxu0 0
        %1224 = vmatprep.subr.bf16.mxu0 0
        %1225 = vmatpush2.bf16.msra.mxu0 0
        %1226 = vmatprep.subr.bf16.mxu0 0
        %1227 = vmatpush2.bf16.msra.mxu0 0
        %1228 = vmatprep.subr.bf16.mxu0 0
        %1229 = vmatpush2.bf16.msra.mxu0 0
        %1230 = vmatprep.subr.bf16.mxu0 0
        %1231 = vmatpush2.bf16.msra.mxu0 0
        %1232 = vmatprep.subr.bf16.mxu0 0
        %1233 = vmatpush2.bf16.msra.mxu0 0
        %1234 = vmatprep.subr.bf16.mxu0 0
        %1235 = vmatpush2.bf16.msra.mxu0 0
        %1236 = vmatprep.mubr.bf16.mxu0 0
        %1237 = vmatmul.mubr.bf16.gmra.mxu0 %v1181
        %v1238 = vpop.f32.mrf.mxu0
        %v1239 = vadd.f32 %v1166, %v1238
        %v1240 = vpop.f32.mrf.mxu0
        %v1241 = vpop.f32.mrf.mxu0
        %v1242 = vadd.f32 %v1166, %v1241
        %v1243 = vpop.f32.mrf.mxu0
        %1244 = vmatprep.mubr.bf16.mxu0 0
        %1245 = vmatmul.mubr.bf16.gmra.mxu0 %v1184
        %v1246 = vpop.f32.mrf.mxu0
        %v1247 = vadd.f32 %v1166, %v1246
        %v1248 = vpop.f32.mrf.mxu0
        %v1249 = vpop.f32.mrf.mxu0
        %v1250 = vadd.f32 %v1166, %v1249
        %v1251 = vpop.f32.mrf.mxu0
        %1252 = vmatprep.mubr.bf16.mxu0 0
        %1253 = vmatmul.mubr.bf16.gmra.mxu0 %v1187
        %v1254 = vpop.f32.mrf.mxu0
        %v1255 = vadd.f32 %v1166, %v1254
        %v1256 = vpop.f32.mrf.mxu0
        %v1257 = vpop.f32.mrf.mxu0
        %v1258 = vadd.f32 %v1166, %v1257
        %v1259 = vpop.f32.mrf.mxu0
        %1260 = vmatprep.mubr.bf16.mxu0 0
        %1261 = vmatmul.mubr.bf16.gmra.mxu0 %v1190
        %v1262 = vpop.f32.mrf.mxu0
        %v1263 = vadd.f32 %v1166, %v1262
        %v1264 = vpop.f32.mrf.mxu0
        %v1265 = vpop.f32.mrf.mxu0
        %v1266 = vadd.f32 %v1166, %v1265
        %v1267 = vpop.f32.mrf.mxu0
        %1268 = vmatprep.mubr.bf16.mxu0 0
        %1269 = vmatmul.mubr.bf16.gmra.mxu0 %v1193
        %v1270 = vpop.f32.mrf.mxu0
        %v1271 = vadd.f32 %v1166, %v1270
        %v1272 = vpop.f32.mrf.mxu0
        %v1273 = vpop.f32.mrf.mxu0
        %v1274 = vadd.f32 %v1166, %v1273
        %v1275 = vpop.f32.mrf.mxu0
        %1276 = vmatprep.mubr.bf16.mxu0 0
        %1277 = vmatmul.mubr.bf16.gmra.mxu0 %v1196
        %v1278 = vpop.f32.mrf.mxu0
        %v1279 = vadd.f32 %v1166, %v1278
        %v1280 = vpop.f32.mrf.mxu0
        %v1281 = vpop.f32.mrf.mxu0
        %v1282 = vadd.f32 %v1166, %v1281
        %v1283 = vpop.f32.mrf.mxu0
        %1284 = vmatprep.mubr.bf16.mxu0 0
        %1285 = vmatmul.mubr.bf16.gmra.mxu0 %v1199
        %v1286 = vpop.f32.mrf.mxu0
        %v1287 = vadd.f32 %v1166, %v1286
        %v1288 = vpop.f32.mrf.mxu0
        %v1289 = vpop.f32.mrf.mxu0
        %v1290 = vadd.f32 %v1166, %v1289
        %v1291 = vpop.f32.mrf.mxu0
        %1292 = vmatprep.mubr.bf16.mxu0 0
        %1293 = vmatmul.mubr.bf16.gmra.mxu0 %v1202
        %v1294 = vpop.f32.mrf.mxu0
        %v1295 = vadd.f32 %v1166, %v1294
        %v1296 = vpop.f32.mrf.mxu0
        %v1297 = vpop.f32.mrf.mxu0
        %v1298 = vadd.f32 %v1166, %v1297
        %v1299 = vpop.f32.mrf.mxu0
        %1300 = vdwg.mxu0
        %v1301 = vmax.f32 %v1239, 0.0
        %v1302 = vmax.f32 %v1242, 0.0
        %v1303 = vmax.f32 %v1247, 0.0
        %v1304 = vmax.f32 %v1250, 0.0
        %v1305 = vmax.f32 %v1255, 0.0
        %v1306 = vmax.f32 %v1258, 0.0
        %v1307 = vmax.f32 %v1263, 0.0
        %v1308 = vmax.f32 %v1266, 0.0
        %v1309 = vmax.f32 %v1271, 0.0
        %v1310 = vmax.f32 %v1274, 0.0
        %v1311 = vmax.f32 %v1279, 0.0
        %v1312 = vmax.f32 %v1282, 0.0
        %v1313 = vmax.f32 %v1287, 0.0
        %v1314 = vmax.f32 %v1290, 0.0
        %v1315 = vmax.f32 %v1295, 0.0
        %v1316 = vmax.f32 %v1298, 0.0
        %v1317 = vpack.c.bf16 %v1302, %v1301
        %v1318 = vpack.c.bf16 %v1304, %v1303
        %v1319 = vpack.c.bf16 %v1306, %v1305
        %v1320 = vpack.c.bf16 %v1308, %v1307
        %v1321 = vpack.c.bf16 %v1310, %v1309
        %v1322 = vpack.c.bf16 %v1312, %v1311
        %v1323 = vpack.c.bf16 %v1314, %v1313
        %v1324 = vpack.c.bf16 %v1316, %v1315
        %v1325 = vld [vmem:[%s11] sm:$0xf]
        %v1326 = vld [vmem:[%s11 + $0x4] sm:$0xf]
        %v1327 = vld [vmem:[%s11 + $0x8] sm:$0xf]
        %v1328 = vld [vmem:[%s11 + $0xc] sm:$0xf]
        %v1329 = vld [vmem:[%s11 + $0x10] sm:$0xf]
        %v1330 = vld [vmem:[%s11 + $0x14] sm:$0xf]
        %v1331 = vld [vmem:[%s12] sm:$0x1]
        %v1333 = vlaneseq
        %v1334 = vshrl.u32 %v1333, 7
        %v1335 = vsub.s32 0, %v1334
        %v1336 = vrot.slane %v1331, %v1335
        %v1344 = vunpack.c.l.b16 %v1325
        %v1345 = vunpack.c.l.b16 %v1326
        %v1346 = vunpack.c.l.b16 %v1327
        %v1347 = vunpack.c.l.b16 %v1328
        %v1348 = vunpack.c.l.b16 %v1329
        %v1349 = vunpack.c.l.b16 %v1330
        %v1350 = vpack.c.b16 %v1345, %v1344
        %v1351 = vpack.c.b16 %v1347, %v1346
        %v1352 = vpack.c.b16 %v1349, %v1348
        %v1357 = vsel %vm697, %v1317, 0
        %v1360 = vsel %vm697, %v1318, 0
        %v1363 = vsel %vm697, %v1319, 0
        %v1366 = vsel %vm697, %v1320, 0
        %v1369 = vsel %vm697, %v1321, 0
        %v1372 = vsel %vm697, %v1322, 0
        %v1375 = vsel %vm697, %v1323, 0
        %v1378 = vsel %vm697, %v1324, 0
        %1380 = vmatprep.subr.bf16.mxu0 0
        %1381 = vmatpush1.bf16.msra.mxu0 0
        %1382 = vmatprep.subr.bf16.mxu0 0
        %1383 = vmatpush1.bf16.msra.mxu0 0
        %1384 = vmatprep.subr.bf16.mxu0 0
        %1385 = vmatpush1.bf16.msra.mxu0 0
        %1386 = vmatprep.subr.bf16.mxu0 0
        %1387 = vmatpush1.bf16.msra.mxu0 0
        %1388 = vmatprep.subr.bf16.mxu0 0
        %1389 = vmatpush1.bf16.msra.mxu0 0
        %1390 = vmatprep.subr.bf16.mxu0 0
        %1391 = vmatpush1.bf16.msra.mxu0 %v1352
        %1392 = vmatprep.subr.bf16.mxu0 0
        %1393 = vmatpush1.bf16.msra.mxu0 %v1351
        %1394 = vmatprep.subr.bf16.mxu0 0
        %1395 = vmatpush1.bf16.msra.mxu0 %v1350
        %1396 = vmatprep.subr.bf16.mxu0 0
        %1397 = vmatpush2.bf16.msra.mxu0 0
        %1398 = vmatprep.subr.bf16.mxu0 0
        %1399 = vmatpush2.bf16.msra.mxu0 0
        %1400 = vmatprep.subr.bf16.mxu0 0
        %1401 = vmatpush2.bf16.msra.mxu0 0
        %1402 = vmatprep.subr.bf16.mxu0 0
        %1403 = vmatpush2.bf16.msra.mxu0 0
        %1404 = vmatprep.subr.bf16.mxu0 0
        %1405 = vmatpush2.bf16.msra.mxu0 0
        %1406 = vmatprep.subr.bf16.mxu0 0
        %1407 = vmatpush2.bf16.msra.mxu0 0
        %1408 = vmatprep.subr.bf16.mxu0 0
        %1409 = vmatpush2.bf16.msra.mxu0 0
        %1410 = vmatprep.subr.bf16.mxu0 0
        %1411 = vmatpush2.bf16.msra.mxu0 0
        %1412 = vmatprep.mubr.bf16.mxu0 0
        %1413 = vmatmul.mubr.bf16.gmra.mxu0 %v1357
        %v1414 = vpop.f32.mrf.mxu0
        %v1415 = vadd.f32 %v1336, %v1414
        %v1416 = vpop.f32.mrf.mxu0
        %v1417 = vpop.f32.mrf.mxu0
        %v1418 = vadd.f32 %v1336, %v1417
        %v1419 = vpop.f32.mrf.mxu0
        %1420 = vmatprep.mubr.bf16.mxu0 0
        %1421 = vmatmul.mubr.bf16.gmra.mxu0 %v1360
        %v1422 = vpop.f32.mrf.mxu0
        %v1423 = vadd.f32 %v1336, %v1422
        %v1424 = vpop.f32.mrf.mxu0
        %v1425 = vpop.f32.mrf.mxu0
        %v1426 = vadd.f32 %v1336, %v1425
        %v1427 = vpop.f32.mrf.mxu0
        %1428 = vmatprep.mubr.bf16.mxu0 0
        %1429 = vmatmul.mubr.bf16.gmra.mxu0 %v1363
        %v1430 = vpop.f32.mrf.mxu0
        %v1431 = vadd.f32 %v1336, %v1430
        %v1432 = vpop.f32.mrf.mxu0
        %v1433 = vpop.f32.mrf.mxu0
        %v1434 = vadd.f32 %v1336, %v1433
        %v1435 = vpop.f32.mrf.mxu0
        %1436 = vmatprep.mubr.bf16.mxu0 0
        %1437 = vmatmul.mubr.bf16.gmra.mxu0 %v1366
        %v1438 = vpop.f32.mrf.mxu0
        %v1439 = vadd.f32 %v1336, %v1438
        %v1440 = vpop.f32.mrf.mxu0
        %v1441 = vpop.f32.mrf.mxu0
        %v1442 = vadd.f32 %v1336, %v1441
        %v1443 = vpop.f32.mrf.mxu0
        %1444 = vmatprep.mubr.bf16.mxu0 0
        %1445 = vmatmul.mubr.bf16.gmra.mxu0 %v1369
        %v1446 = vpop.f32.mrf.mxu0
        %v1447 = vadd.f32 %v1336, %v1446
        %v1448 = vpop.f32.mrf.mxu0
        %v1449 = vpop.f32.mrf.mxu0
        %v1450 = vadd.f32 %v1336, %v1449
        %v1451 = vpop.f32.mrf.mxu0
        %1452 = vmatprep.mubr.bf16.mxu0 0
        %1453 = vmatmul.mubr.bf16.gmra.mxu0 %v1372
        %v1454 = vpop.f32.mrf.mxu0
        %v1455 = vadd.f32 %v1336, %v1454
        %v1456 = vpop.f32.mrf.mxu0
        %v1457 = vpop.f32.mrf.mxu0
        %v1458 = vadd.f32 %v1336, %v1457
        %v1459 = vpop.f32.mrf.mxu0
        %1460 = vmatprep.mubr.bf16.mxu0 0
        %1461 = vmatmul.mubr.bf16.gmra.mxu0 %v1375
        %v1462 = vpop.f32.mrf.mxu0
        %v1463 = vadd.f32 %v1336, %v1462
        %v1464 = vpop.f32.mrf.mxu0
        %v1465 = vpop.f32.mrf.mxu0
        %v1466 = vadd.f32 %v1336, %v1465
        %v1467 = vpop.f32.mrf.mxu0
        %1468 = vmatprep.mubr.bf16.mxu0 0
        %1469 = vmatmul.mubr.bf16.gmra.mxu0 %v1378
        %v1470 = vpop.f32.mrf.mxu0
        %v1471 = vadd.f32 %v1336, %v1470
        %v1472 = vpop.f32.mrf.mxu0
        %v1473 = vpop.f32.mrf.mxu0
        %v1474 = vadd.f32 %v1336, %v1473
        %v1475 = vpop.f32.mrf.mxu0
        %1476 = vdwg.mxu0
        %v1477 = vpack.c.bf16 %v1418, %v1415
        %v1478 = vpack.c.bf16 %v1426, %v1423
        %v1479 = vpack.c.bf16 %v1434, %v1431
        %v1480 = vpack.c.bf16 %v1442, %v1439
        %v1481 = vpack.c.bf16 %v1450, %v1447
        %v1482 = vpack.c.bf16 %v1458, %v1455
        %v1483 = vpack.c.bf16 %v1466, %v1463
        %v1484 = vpack.c.bf16 %v1474, %v1471
        %v1493 = vunpack.c.l.b16 %v1477
        %v1494 = vunpack.c.h.b16 %v1477
        %v1495 = vunpack.c.l.b16 %v1478
        %v1496 = vunpack.c.h.b16 %v1478
        %v1497 = vunpack.c.l.b16 %v1479
        %v1498 = vunpack.c.h.b16 %v1479
        %v1499 = vunpack.c.l.b16 %v1480
        %v1500 = vunpack.c.h.b16 %v1480
        %v1501 = vunpack.c.l.b16 %v1481
        %v1502 = vunpack.c.h.b16 %v1481
        %v1503 = vunpack.c.l.b16 %v1482
        %v1504 = vunpack.c.h.b16 %v1482
        %v1505 = vunpack.c.l.b16 %v1483
        %v1506 = vunpack.c.h.b16 %v1483
        %v1507 = vunpack.c.l.b16 %v1484
        %v1508 = vunpack.c.h.b16 %v1484
        %v1509 = vpack.c.b16 %v1493, %v1493
        %v1510 = vpack.c.b16 %v1494, %v1494
        %v1511 = vpack.c.b16 %v1495, %v1495
        %v1512 = vpack.c.b16 %v1496, %v1496
        %v1513 = vpack.c.b16 %v1497, %v1497
        %v1514 = vpack.c.b16 %v1498, %v1498
        %v1515 = vpack.c.b16 %v1499, %v1499
        %v1516 = vpack.c.b16 %v1500, %v1500
        %v1517 = vpack.c.b16 %v1501, %v1501
        %v1518 = vpack.c.b16 %v1502, %v1502
        %v1519 = vpack.c.b16 %v1503, %v1503
        %v1520 = vpack.c.b16 %v1504, %v1504
        %v1521 = vpack.c.b16 %v1505, %v1505
        %v1522 = vpack.c.b16 %v1506, %v1506
        %v1523 = vpack.c.b16 %v1507, %v1507
        %v1524 = vpack.c.b16 %v1508, %v1508
        %1541 = vst [vmem:[%s434] sm:$0xf] %v1509
        %1542 = vst [vmem:[%s434 + $0x4] sm:$0xf] %v1510
        %1543 = vst [vmem:[%s434 + $0x8] sm:$0xf] %v1511
        %1544 = vst [vmem:[%s434 + $0xc] sm:$0xf] %v1512
        %1545 = vst [vmem:[%s434 + $0x10] sm:$0xf] %v1513
        %1546 = vst [vmem:[%s434 + $0x14] sm:$0xf] %v1514
        %1547 = vst [vmem:[%s434 + $0x18] sm:$0xf] %v1515
        %1548 = vst [vmem:[%s434 + $0x1c] sm:$0xf] %v1516
        %1549 = vst [vmem:[%s434 + $0x20] sm:$0xf] %v1517
        %1550 = vst [vmem:[%s434 + $0x24] sm:$0xf] %v1518
        %1551 = vst [vmem:[%s434 + $0x28] sm:$0xf] %v1519
        %1552 = vst [vmem:[%s434 + $0x2c] sm:$0xf] %v1520
        %1553 = vst [vmem:[%s434 + $0x30] sm:$0xf] %v1521
        %1554 = vst [vmem:[%s434 + $0x34] sm:$0xf] %v1522
        %1555 = vst [vmem:[%s434 + $0x38] sm:$0xf] %v1523
        %1556 = vst [vmem:[%s434 + $0x3c] sm:$0xf] %v1524
        %s1557 = sand.u32 %s313, 1
        %s1558 = scalar_lea.sflag [#allocation3], %s1557
        %s1559 = sand.u32 %s313, 1
        %s1560 = smul.addr %s1559, 64
        %s1561 = scalar_lea.vmem [#allocation2], %s1560
        // Predicated region
        $region73: #{tpu_custom_call.1} parent=71 // pred_check
          %p1562 = pneg %p323
        $region74: #{tpu_custom_call.1} parent=71 // pred_check_branch
          %1564 = sbr.rel (%p1562) target = $region76
        $region75: #{tpu_custom_call.1} parent=71 // pred_region
          %s1565 = smul.u32 16, %s27
          %s1567 = ssub.s32 1024, 1024
          %1568 = vsyncadd %s1558, %s1567
          %s1569 = smul.addr %s1565, 64
          %s1570 = scalar_lea.hbm %s13, %s1569
          %s1571 = sshll.u32 %s1561, 4
          %s1572 = int_to_ptr.vmem [resolvable:$true] %s1571
          %1577 = dma.vmem_to_hbm [thread:$0]  %s1572, 1024, %s1570, %s1558, 64, 64, 4
        $region76: #{tpu_custom_call.1} parent=71 // pred_fallthru
          _
      $region72: #{tpu_custom_call.1} parent=5 // pred_fallthru
        _
      %p1578 = scmp.le.s32.totalorder 2, %s22
      // Predicated region
      $region77: #{tpu_custom_call.1} parent=5 // pred_check
        %p1579 = pneg %p1578
      $region78: #{tpu_custom_call.1} parent=5 // pred_check_branch
        %1581 = sbr.rel (%p1579) target = $region80
      $region79: #{tpu_custom_call.1} parent=5 // pred_region
        %s1582 = ssub.s32 %s22, 2
        // Predicated region
        $region81: #{tpu_custom_call.1} parent=79 // pred_check
          %p1583 = pneg %p329
        $region82: #{tpu_custom_call.1} parent=79 // pred_check_branch
          %1585 = sbr.rel (%p1583) target = $region84
        $region83: #{tpu_custom_call.1} parent=79 // pred_region
          %s1586 = sand.u32 %s314, 1
          %s1587 = scalar_lea.sflag [#allocation3], %s1586
          %s1588 = sand.u32 %s314, 1
          %s1589 = smul.addr %s1588, 64
          %s1590 = scalar_lea.vmem [#allocation2], %s1589
          %1591 = dma.done %s1587, 1024
        $region84: #{tpu_custom_call.1} parent=79 // pred_fallthru
          _
      $region80: #{tpu_custom_call.1} parent=5 // pred_fallthru
        _
    $region6: #{tpu_custom_call.1} parent=1 // loop_footer
      %s26 = sadd.s32 1, %s22
    $region7: #{tpu_custom_call.1} parent=1 // loop_footer_branch
      %21 = sbr.rel target = $region3
    $region8: #{tpu_custom_call.1} parent=1 // loop_exit
      _
    %1592 = vsyncpa [#allocation3], 1
    %s1593 = scalar_lea.sflag [#allocation3], 1
    %1594 = vsyncpa %s1593, 1

</llo_original>
